<compile_context>
chip_gen: v7x
topology: tpu7x:2x2x1
jax: 0.10.0
libtpu: 0.0.40
codegen_flags: <defaults>
</compile_context>

<pallas_src>
from functools import partial

import numpy as np
import jax
import jax.numpy as jnp
from jax.experimental import pallas as pl
from jax.experimental.pallas import tpu as pltpu


_VMEM_BUDGET = 20 * 1024 * 1024      # per-step working-set budget (double-buffered)
_VMEM_LIMIT = 40 * 1024 * 1024       # scoped VMEM limit (< v7x's 64 MiB physical)
_INV_SQRT2 = 0.7071067811865476

# ----------------------------------------------------------------------------------
# Clifford algebra Cl(g1, g2, g3): blade multiplication table and weight-kernel builder
# (same structure as cliffordlayers' get_3d_clifford_kernel: y = x * w block-wise).
# ----------------------------------------------------------------------------------
BLADES = [(), (1,), (2,), (3,), (1, 2), (1, 3), (2, 3), (1, 2, 3)]


def _blade_mul(a, b, g):
    """Geometric product of basis blades a*b in Cl(g). Returns (sign, result_blade)."""
    arr = list(a) + list(b)
    sign = 1.0
    i = 0
    while i < len(arr) - 1:
        if arr[i] == arr[i + 1]:
            sign *= g[arr[i] - 1]
            arr = arr[:i] + arr[i + 2:]
            i = max(i - 1, 0)
        elif arr[i] > arr[i + 1]:
            arr[i], arr[i + 1] = arr[i + 1], arr[i]
            sign = -sign
            i = max(i - 1, 0)
        else:
            i += 1
    return sign, tuple(arr)


def _clifford_paths(g):
    """path[(out_blade, in_blade)] = (weight_blade, sign) s.t. b_in * b_w = sign * b_out."""
    path = {}
    for j in range(8):
        for k in range(8):
            s, res = _blade_mul(BLADES[j], BLADES[k], g)
            i = BLADES.index(res)
            path[(i, j)] = (k, float(s))
    return path


def build_clifford_weight_matrix(w_blades, g):
    """w_blades: (8, Cout, Cin, *rest) -> K: (8*Cout, 8*Cin, *rest)."""
    path = _clifford_paths(tuple(float(v) for v in g))
    rows = []
    for i in range(8):
        cols = []
        for j in range(8):
            k, s = path[(i, j)]
            cols.append(s * w_blades[k])
        rows.append(jnp.concatenate(cols, axis=1))
    return jnp.concatenate(rows, axis=0)


# ----------------------------------------------------------------------------------
# Tile sizing (VMEM-budget aware, generation-safe: budget << 32 MiB default scoped
# limit and << v7x's 64 MiB physical VMEM).  Axes are padded to the tile wrapper-side,
# never falling back to a single full-dim block.
# ----------------------------------------------------------------------------------
def _round_up(x, m):
    return -(-x // m) * m


def _spectral_tiles(cin, cout, M, budget_bytes=_VMEM_BUDGET):
    # lane chunk: keeps the stacked (8*Cout, tl) f32 accumulator within the vreg budget
    tl = 256 if cout <= 12 else 128
    # double-buffered bytes per lane: x f32 + weights bf16 + out f32
    per_lane = 2 * (8 * cin * 4 + 8 * cin * cout * 2 + 8 * cout * 4)
    tm_budget = max(tl, (budget_bytes // per_lane) // tl * tl)
    # prefer >= 4 pipeline steps along the mode axis so the DMA prefetch can hide
    tm_steps = max(tl, _round_up(-(-M // 4), tl))
    tm = min(tm_budget, tm_steps)
    m_pad = _round_up(M, tm)
    return tl, tm, m_pad


def _conv_tiles(K, O, N, budget_bytes=_VMEM_BUDGET, cap=16384):
    # double-buffered bytes per lane: x bf16 + residual f32 + out f32
    per_lane = 2 * (2 * K + 4 * O + 4 * O)
    tn = max(128, (budget_bytes // per_lane) // 128 * 128)
    tn = min(tn, cap, _round_up(N, 128))
    n_pad = _round_up(N, tn)
    return tn, n_pad


# ----------------------------------------------------------------------------------
# Pallas kernel 1: per-Fourier-mode Clifford (geometric product) channel mixing.
#   out[b, i*Cout+o, m] = sum_{j, c} sign(i,j) * x[b, c*8+j, m] * w[c, k(i,j)*Cout+o, m]
# Signs / blade indices are trace-time constants; weights are streamed un-expanded
# (8x fewer bytes than an expanded Clifford matrix) in bf16 and upcast in-kernel.
# ----------------------------------------------------------------------------------
def _spectral_mul_kernel(x_ref, w_ref, o_ref, *, path, cin, cout, tl, hold_col):
    # x_ref: (1, cin*8, tm) f32  (rows channel-major: c*8 + j)
    # w_ref: (cin, 8*cout, tm) bf16 (rows: k*cout + o)
    # o_ref: (1, 8*cout, tm) f32  (rows blade-major: i*cout + o)
    tm = x_ref.shape[-1]
    n_chunks = tm // tl

    def do_chunk(off):
        def c_body(c, accs):
            # all 8 input-blade rows of channel c: one aligned (8, tl) load
            x8 = x_ref[0, pl.ds(pl.multiple_of(c * 8, 8), 8), pl.ds(off, tl)]
            if hold_col:
                # whole weight column of channel c, held in vregs across all 64 FMAs
                w_col = w_ref[c, :, pl.ds(off, tl)].astype(jnp.float32)   # (8*cout, tl)
                w_k = [jax.lax.slice_in_dim(w_col, k * cout, (k + 1) * cout, axis=0)
                       for k in range(8)]
            new = list(accs)
            for j in range(8):                                   # input blade (unrolled)
                xb = jnp.broadcast_to(x8[j:j + 1, :], (cout, tl))
                for i in range(8):                               # output blade (unrolled)
                    k, s = path[(i, j)]
                    if hold_col:
                        w_kc = w_k[k]
                    else:
                        w_kc = w_ref[c, pl.ds(k * cout, cout),
                                     pl.ds(off, tl)].astype(jnp.float32)
                    term = xb * w_kc
                    if s == 1.0:
                        new[i] = new[i] + term
                    elif s == -1.0:
                        new[i] = new[i] - term
                    else:                                        # general metric signature
                        new[i] = new[i] + s * term
            return tuple(new)

        init = tuple(jnp.zeros((cout, tl), jnp.float32) for _ in range(8))
        accs = jax.lax.fori_loop(0, cin, c_body, init, unroll=1 if hold_col else 2)
        for i in range(8):
            o_ref[0, pl.ds(i * cout, cout), pl.ds(off, tl)] = accs[i]

    if n_chunks == 1:
        do_chunk(0)
    else:
        def chunk_body(ch, carry):
            do_chunk(pl.multiple_of(ch * tl, 128))
            return carry
        jax.lax.fori_loop(0, n_chunks, chunk_body, 0)


def spectral_clifford_mul(x_ft, w_ft_m, path):
    """x_ft: (B, Cin*8, M) f32 channel-major rows; w_ft_m: (Cin, 8*Cout, M) bf16;
    returns (B, 8*Cout, M) f32, blade-major rows."""
    B, R, M = x_ft.shape
    Cin = R // 8
    Cout = w_ft_m.shape[1] // 8
    tl, tm, m_pad = _spectral_tiles(Cin, Cout, M)
    if m_pad != M:
        x_ft = jnp.pad(x_ft, ((0, 0), (0, 0), (0, m_pad - M)))
        w_ft_m = jnp.pad(w_ft_m, ((0, 0), (0, 0), (0, m_pad - M)))
    hold_col = (Cout * tl) <= 2048           # weight column fits comfortably in vregs
    kernel = partial(_spectral_mul_kernel, path=path, cin=Cin, cout=Cout,
                     tl=tl, hold_col=hold_col)
    out = pl.pallas_call(
        kernel,
        out_shape=jax.ShapeDtypeStruct((B, 8 * Cout, m_pad), jnp.float32),
        grid_spec=pltpu.PrefetchScalarGridSpec(
            num_scalar_prefetch=0,
            # modes outer / batch inner: the (b-independent) weight block is revisited,
            # i.e. fetched once per mode tile instead of once per (mode, batch) step.
            grid=(m_pad // tm, B),
            in_specs=[
                pl.BlockSpec((1, 8 * Cin, tm), lambda m, b: (b, 0, m)),
                pl.BlockSpec((Cin, 8 * Cout, tm), lambda m, b: (0, 0, m)),
            ],
            out_specs=pl.BlockSpec((1, 8 * Cout, tm), lambda m, b: (b, 0, m)),
        ),
        compiler_params=pltpu.CompilerParams(
            dimension_semantics=("parallel", "parallel"),
            vmem_limit_bytes=_VMEM_LIMIT),
    )(x_ft, w_ft_m)
    return out[:, :, :M] if m_pad != M else out


# ----------------------------------------------------------------------------------
# Pallas kernel 2: fused 1x1x1 Clifford conv + bias + residual add + exact GELU,
# computed transposed so the spatial index is the lane dim (lane-dense loads/stores):
#   out[b, :, n_tile] = gelu( W @ x[b, :, n_tile] + bias + fourier[b, :, n_tile] )
# ----------------------------------------------------------------------------------
def _conv_fuse_kernel(x_ref, w_ref, b_ref, f_ref, o_ref):
    x = x_ref[0]                                            # (8*Cin, TN) bf16
    acc = jnp.dot(w_ref[...], x,
                  preferred_element_type=jnp.float32)       # MXU bf16, f32 accumulate
    v = acc + b_ref[...] + f_ref[0]                         # bias (8*Cout,1) broadcasts
    o_ref[0] = 0.5 * v * (1.0 + jax.lax.erf(v * _INV_SQRT2))


def conv1x1_add_gelu(x_cm, w_mat, bias_col, f_cm):
    """x_cm: (B, 8*Cin, N) bf16, w_mat: (8*Cout, 8*Cin) bf16, bias_col: (8*Cout, 1) f32,
    f_cm: (B, 8*Cout, N) f32 -> (B, 8*Cout, N) f32."""
    B, K, N = x_cm.shape
    O = w_mat.shape[0]
    tn, n_pad = _conv_tiles(K, O, N)
    if n_pad != N:
        x_cm = jnp.pad(x_cm, ((0, 0), (0, 0), (0, n_pad - N)))
        f_cm = jnp.pad(f_cm, ((0, 0), (0, 0), (0, n_pad - N)))
    out = pl.pallas_call(
        _conv_fuse_kernel,
        out_shape=jax.ShapeDtypeStruct((B, O, n_pad), jnp.float32),
        grid_spec=pltpu.PrefetchScalarGridSpec(
            num_scalar_prefetch=0,
            grid=(B, n_pad // tn),
            in_specs=[
                pl.BlockSpec((1, K, tn), lambda b, n: (b, 0, n)),
                pl.BlockSpec((O, K), lambda b, n: (0, 0)),
                pl.BlockSpec((O, 1), lambda b, n: (0, 0)),
                pl.BlockSpec((1, O, tn), lambda b, n: (b, 0, n)),
            ],
            out_specs=pl.BlockSpec((1, O, tn), lambda b, n: (b, 0, n)),
        ),
        compiler_params=pltpu.CompilerParams(
            dimension_semantics=("parallel", "parallel"),
            vmem_limit_bytes=_VMEM_LIMIT),
    )(x_cm, w_mat, bias_col, f_cm)
    return out[:, :, :N] if n_pad != N else out


# ----------------------------------------------------------------------------------
# Fourier-spectrum gather / scatter of the kept corner modes (XLA glue, no Pallas)
# ----------------------------------------------------------------------------------
def _take_corners(a, m, axis):
    n = a.shape[axis]
    lo = jax.lax.slice_in_dim(a, 0, m, axis=axis)
    hi = jax.lax.slice_in_dim(a, n - m, n, axis=axis)
    return jnp.concatenate([lo, hi], axis=axis)


def _scatter_corners(kept, full_dims, axes=(3, 4, 5)):
    """Inverse of _take_corners: place low/high kept modes into a zero-filled full
    spectrum with a single concat per axis (no full-tensor dynamic-update-slices)."""
    out = kept
    for ax, n in zip(axes, full_dims):
        two_m = out.shape[ax]
        if n > two_m:
            m = two_m // 2
            lo = jax.lax.slice_in_dim(out, 0, m, axis=ax)
            hi = jax.lax.slice_in_dim(out, m, two_m, axis=ax)
            mid_shape = list(out.shape)
            mid_shape[ax] = n - two_m
            out = jnp.concatenate([lo, jnp.zeros(mid_shape, out.dtype), hi], axis=ax)
    return out


# ----------------------------------------------------------------------------------
# Full forward pass
# ----------------------------------------------------------------------------------
def clifford_fourier_basic_block3d(x, params, *, g, modes, use_pallas=True):
    """x: (B, Cin, X, Y, Z, 8) float32  ->  (B, Cout, X, Y, Z, 8) float32."""
    B, Cin, X, Y, Z, I = x.shape
    assert I == 8, "3D Clifford algebra has 8 blades"
    m1, m2, m3 = modes
    assert 2 * m1 <= X and 2 * m2 <= Y and 2 * m3 <= Z, "2*modes must fit the spatial extent"
    w_ft, w_conv, b_conv = params["w_ft"], params["w_conv"], params["b_conv"]
    Cout = w_conv.shape[1]
    path = _clifford_paths(tuple(float(v) for v in g))

    # blade-major internal layout (same flattening as torch clifford_convnd)
    xb = jnp.transpose(x, (0, 5, 1, 2, 3, 4))               # (B, 8, Cin, X, Y, Z)

    # =================== Fourier branch (CliffordSpectralConv3d) ===================
    # Clifford Fourier transform: 8 blades -> 4 complex dual pairs (e123 as imaginary)
    d1 = xb[:, 0] + 1j * xb[:, 7]
    d2 = xb[:, 1] + 1j * xb[:, 6]
    d3 = xb[:, 2] - 1j * xb[:, 5]
    d4 = xb[:, 3] + 1j * xb[:, 4]
    duals = jnp.stack([d1, d2, d3, d4], axis=1)              # (B, 4, Cin, X, Y, Z) c64
    duals_ft = jnp.fft.fftn(duals, axes=(3, 4, 5))

    kept = duals_ft
    for ax, m in zip((3, 4, 5), (m1, m2, m3)):               # keep low+high corner modes
        kept = _take_corners(kept, m, ax)                    # (B, 4, Cin, 2m1, 2m2, 2m3)

    Mtot = (2 * m1) * (2 * m2) * (2 * m3)
    # dual pairs -> 8 real blade components; stack at axis=2 gives channel-major rows
    # (c*8 + j) with no extra transpose in HBM.
    blades_ft = jnp.stack(
        [kept[:, 0].real, kept[:, 1].real, kept[:, 2].real, kept[:, 3].real,
         kept[:, 3].imag, -kept[:, 2].imag, kept[:, 1].imag, kept[:, 0].imag],
        axis=2,
    )                                                        # (B, Cin, 8, 2m1, 2m2, 2m3)
    x_ft = blades_ft.reshape(B, Cin * 8, Mtot).astype(jnp.float32)

    # bf16 weight stream (same rounded values feed both paths so validation checks the
    # kernel, not the dtype choice).
    # TODO(synk): in a real model, pre-transpose/cast the spectral weights once at
    #             parameter-load time instead of per forward call.
    w_ft_bf = w_ft.astype(jnp.bfloat16)

    if use_pallas:
        w_m = jnp.transpose(w_ft_bf, (1, 0, 2, 3, 4, 5)).reshape(Cin, 8 * Cout, Mtot)
        out_ft_cm = spectral_clifford_mul(x_ft, w_m, path)   # (B, 8*Cout, Mtot)
    else:
        # reference: identical bf16-rounded weights, f32 (HIGHEST) accumulation
        w_oc = jnp.transpose(w_ft_bf.astype(jnp.float32),
                             (0, 2, 1, 3, 4, 5)).reshape(8, Cout, Cin, Mtot)
        k_ft = build_clifford_weight_matrix(w_oc, g)         # (8*Cout, 8*Cin, Mtot)
        x_bm = x_ft.reshape(B, Cin, 8, Mtot).transpose(0, 2, 1, 3).reshape(B, 8 * Cin, Mtot)
        out_ft_cm = jnp.einsum("bim,oim->bom", x_bm, k_ft,
                               precision=jax.lax.Precision.HIGHEST)
    out_ft = out_ft_cm.reshape(B, 8, Cout, 2 * m1, 2 * m2, 2 * m3)

    # blades -> dual pairs, scatter kept modes into the full spectrum, inverse FFT
    o1 = out_ft[:, 0] + 1j * out_ft[:, 7]
    o2 = out_ft[:, 1] + 1j * out_ft[:, 6]
    o3 = out_ft[:, 2] - 1j * out_ft[:, 5]
    o4 = out_ft[:, 3] + 1j * out_ft[:, 4]
    out_duals_kept = jnp.stack([o1, o2, o3, o4], axis=1)     # (B, 4, Cout, 2m1, 2m2, 2m3)
    # TODO(synk): the corner gather/scatter could be folded into kernel 1's index_maps
    #             (grid over octants) to drop these extra HBM round trips entirely.
    full = _scatter_corners(out_duals_kept, (X, Y, Z))       # (B, 4, Cout, X, Y, Z)
    out_duals = jnp.fft.ifftn(full, axes=(3, 4, 5))
    x1b = jnp.stack(
        [out_duals[:, 0].real, out_duals[:, 1].real, out_duals[:, 2].real, out_duals[:, 3].real,
         out_duals[:, 3].imag, -out_duals[:, 2].imag, out_duals[:, 1].imag, out_duals[:, 0].imag],
        axis=1,
    ).astype(jnp.float32)                                    # (B, 8, Cout, X, Y, Z)

    # =================== 1x1x1 Clifford conv + add + GELU (fused) ===================
    # TODO(synk): only the module defaults (kernel_size=1, stride=1, padding=0) are
    #             implemented; a spatial k>1 Clifford conv would need an im2col path.
    k_conv = build_clifford_weight_matrix(w_conv, g)         # (8*Cout, 8*Cin)
    XYZ = X * Y * Z
    x_cm = xb.reshape(B, 8 * Cin, XYZ)                       # channel-major, no transpose
    f_cm = x1b.reshape(B, 8 * Cout, XYZ)
    # bf16 inputs for the MXU (both paths consume identical rounded values)
    x_cm_bf = x_cm.astype(jnp.bfloat16)
    k_conv_bf = k_conv.astype(jnp.bfloat16)

    if use_pallas:
        bias_col = b_conv.reshape(8 * Cout, 1).astype(jnp.float32)
        y_cm = conv1x1_add_gelu(x_cm_bf, k_conv_bf, bias_col, f_cm)
    else:
        v = (jnp.einsum("oi,bin->bon", k_conv_bf, x_cm_bf,
                        preferred_element_type=jnp.float32)
             + b_conv.reshape(1, 8 * Cout, 1).astype(jnp.float32) + f_cm)
        y_cm = 0.5 * v * (1.0 + jax.lax.erf(v * _INV_SQRT2))

    y = y_cm.reshape(B, 8, Cout, X, Y, Z)
    return jnp.transpose(y, (0, 2, 3, 4, 5, 1))              # (B, Cout, X, Y, Z, 8)


# ----------------------------------------------------------------------------------
# Deterministic parameter init (shapes match the PyTorch module's __init__)
# ----------------------------------------------------------------------------------
def init_params(key, in_channels, out_channels, modes):
    m1, m2, m3 = modes
    k1, k2, k3 = jax.random.split(key, 3)
    scale = 1.0 / (in_channels * out_channels)
    w_ft = scale * jax.random.uniform(
        k1, (8, in_channels, out_channels, 2 * m1, 2 * m2, 2 * m3), dtype=jnp.float32)
    w_conv = jax.random.normal(k2, (8, out_channels, in_channels), dtype=jnp.float32) \
        * (1.0 / np.sqrt(8 * in_channels))
    b_conv = 0.01 * jax.random.normal(k3, (8, out_channels), dtype=jnp.float32)
    return {"w_ft": w_ft, "w_conv": w_conv, "b_conv": b_conv}


if __name__ == "__main__":
    B, Cin, Cout = 2, 4, 4
    X = Y = Z = 8
    modes = (4, 4, 4)
    g = (1.0, 1.0, 1.0)

    key = jax.random.PRNGKey(0)
    kx, kp = jax.random.split(key)
    x = jax.random.normal(kx, (B, Cin, X, Y, Z, 8), dtype=jnp.float32)
    params = init_params(kp, Cin, Cout, modes)

    fwd_pallas = jax.jit(partial(clifford_fourier_basic_block3d, g=g, modes=modes,
                                 use_pallas=True))
    fwd_ref = jax.jit(partial(clifford_fourier_basic_block3d, g=g, modes=modes,
                              use_pallas=False))

    y = jax.block_until_ready(fwd_pallas(x, params))
    y_ref = jax.block_until_ready(fwd_ref(x, params))

    assert y.shape == (B, Cout, X, Y, Z, 8)
    assert y.dtype == jnp.float32
    assert bool(jnp.all(jnp.isfinite(y)))
    max_diff = float(jnp.max(jnp.abs(y - y_ref)))
    assert bool(jnp.allclose(y, y_ref, atol=2e-3, rtol=2e-3)), f"max abs diff {max_diff}"
    print("KERNEL_OK")
</pallas_src>

<mosaic_0001>
module attributes {stable_mosaic.version = 11 : i64} {
  func.func @_spectral_mul_kernel(%arg0: i32, %arg1: i32, %arg2: memref<1x32x256xf32, #tpu.memory_space<vmem>>, %arg3: memref<4x32x256xbf16, #tpu.memory_space<vmem>>, %arg4: memref<1x32x256xf32, #tpu.memory_space<vmem>>) attributes {dimension_semantics = [#tpu.dimension_semantics<parallel>, #tpu.dimension_semantics<parallel>], iteration_bounds = array<i64: 2, 2>, scalar_prefetch = 0 : i64, scratch_operands = 0 : i64, tpu.core_type = #tpu.core_type<tc>, window_params = [{transform_indices = @transform_0, window_bounds = array<i64: 1, 32, 256>}, {transform_indices = @transform_1, window_bounds = array<i64: 4, 32, 256>}, {transform_indices = @transform_2, window_bounds = array<i64: 1, 32, 256>}]} {
    %cst = arith.constant 0.000000e+00 : f32
    %0 = vector.broadcast %cst : f32 to vector<4x256xf32>
    %cst_0 = arith.constant 0.000000e+00 : f32
    %1 = vector.broadcast %cst_0 : f32 to vector<4x256xf32>
    %cst_1 = arith.constant 0.000000e+00 : f32
    %2 = vector.broadcast %cst_1 : f32 to vector<4x256xf32>
    %cst_2 = arith.constant 0.000000e+00 : f32
    %3 = vector.broadcast %cst_2 : f32 to vector<4x256xf32>
    %cst_3 = arith.constant 0.000000e+00 : f32
    %4 = vector.broadcast %cst_3 : f32 to vector<4x256xf32>
    %cst_4 = arith.constant 0.000000e+00 : f32
    %5 = vector.broadcast %cst_4 : f32 to vector<4x256xf32>
    %cst_5 = arith.constant 0.000000e+00 : f32
    %6 = vector.broadcast %cst_5 : f32 to vector<4x256xf32>
    %cst_6 = arith.constant 0.000000e+00 : f32
    %7 = vector.broadcast %cst_6 : f32 to vector<4x256xf32>
    %c0_i32 = arith.constant 0 : i32
    %c4_i32 = arith.constant 4 : i32
    %8 = arith.addi %c0_i32, %c4_i32 : i32
    %c1_i32 = arith.constant 1 : i32
    %9:8 = scf.for %arg5 = %c0_i32 to %8 step %c1_i32 iter_args(%arg6 = %0, %arg7 = %1, %arg8 = %2, %arg9 = %3, %arg10 = %4, %arg11 = %5, %arg12 = %6, %arg13 = %7) -> (vector<4x256xf32>, vector<4x256xf32>, vector<4x256xf32>, vector<4x256xf32>, vector<4x256xf32>, vector<4x256xf32>, vector<4x256xf32>, vector<4x256xf32>)  : i32 {
      %c8_i32 = arith.constant 8 : i32
      %34 = arith.muli %arg5, %c8_i32 : i32
      %35 = tpu.assume_multiple %34, 8 : i32
      %c0_24 = arith.constant 0 : index
      %36 = arith.index_cast %35 : i32 to index
      %c0_25 = arith.constant 0 : index
      %37 = vector.load %arg2[%c0_24, %36, %c0_25] : memref<1x32x256xf32, #tpu.memory_space<vmem>>, vector<1x8x256xf32>
      %38 = vector.shape_cast %37 : vector<1x8x256xf32> to vector<8x256xf32>
      %39 = arith.index_cast %arg5 : i32 to index
      %c0_26 = arith.constant 0 : index
      %c0_27 = arith.constant 0 : index
      %40 = vector.load %arg3[%39, %c0_26, %c0_27] : memref<4x32x256xbf16, #tpu.memory_space<vmem>>, vector<1x32x256xbf16>
      %41 = vector.shape_cast %40 : vector<1x32x256xbf16> to vector<32x256xbf16>
      %42 = arith.extf %41 : vector<32x256xbf16> to vector<32x256xf32>
      %43 = vector.extract_strided_slice %42 {offsets = [0, 0], sizes = [4, 256], strides = [1, 1]} : vector<32x256xf32> to vector<4x256xf32>
      %44 = vector.extract_strided_slice %42 {offsets = [4, 0], sizes = [4, 256], strides = [1, 1]} : vector<32x256xf32> to vector<4x256xf32>
      %45 = vector.extract_strided_slice %42 {offsets = [8, 0], sizes = [4, 256], strides = [1, 1]} : vector<32x256xf32> to vector<4x256xf32>
      %46 = vector.extract_strided_slice %42 {offsets = [12, 0], sizes = [4, 256], strides = [1, 1]} : vector<32x256xf32> to vector<4x256xf32>
      %47 = vector.extract_strided_slice %42 {offsets = [16, 0], sizes = [4, 256], strides = [1, 1]} : vector<32x256xf32> to vector<4x256xf32>
      %48 = vector.extract_strided_slice %42 {offsets = [20, 0], sizes = [4, 256], strides = [1, 1]} : vector<32x256xf32> to vector<4x256xf32>
      %49 = vector.extract_strided_slice %42 {offsets = [24, 0], sizes = [4, 256], strides = [1, 1]} : vector<32x256xf32> to vector<4x256xf32>
      %50 = vector.extract_strided_slice %42 {offsets = [28, 0], sizes = [4, 256], strides = [1, 1]} : vector<32x256xf32> to vector<4x256xf32>
      %51 = vector.extract_strided_slice %38 {offsets = [0, 0], sizes = [1, 256], strides = [1, 1]} : vector<8x256xf32> to vector<1x256xf32>
      %52 = vector.shape_cast %51 : vector<1x256xf32> to vector<1x256xf32>
      %53 = vector.broadcast %52 : vector<1x256xf32> to vector<4x256xf32>
      %54 = arith.mulf %53, %43 : vector<4x256xf32>
      %55 = arith.addf %arg6, %54 : vector<4x256xf32>
      %56 = arith.mulf %53, %44 : vector<4x256xf32>
      %57 = arith.addf %arg7, %56 : vector<4x256xf32>
      %58 = arith.mulf %53, %45 : vector<4x256xf32>
      %59 = arith.addf %arg8, %58 : vector<4x256xf32>
      %60 = arith.mulf %53, %46 : vector<4x256xf32>
      %61 = arith.addf %arg9, %60 : vector<4x256xf32>
      %62 = arith.mulf %53, %47 : vector<4x256xf32>
      %63 = arith.addf %arg10, %62 : vector<4x256xf32>
      %64 = arith.mulf %53, %48 : vector<4x256xf32>
      %65 = arith.addf %arg11, %64 : vector<4x256xf32>
      %66 = arith.mulf %53, %49 : vector<4x256xf32>
      %67 = arith.addf %arg12, %66 : vector<4x256xf32>
      %68 = arith.mulf %53, %50 : vector<4x256xf32>
      %69 = arith.addf %arg13, %68 : vector<4x256xf32>
      %70 = vector.extract_strided_slice %38 {offsets = [1, 0], sizes = [1, 256], strides = [1, 1]} : vector<8x256xf32> to vector<1x256xf32>
      %71 = vector.shape_cast %70 : vector<1x256xf32> to vector<1x256xf32>
      %72 = vector.broadcast %71 : vector<1x256xf32> to vector<4x256xf32>
      %73 = arith.mulf %72, %44 : vector<4x256xf32>
      %74 = arith.addf %55, %73 : vector<4x256xf32>
      %75 = arith.mulf %72, %43 : vector<4x256xf32>
      %76 = arith.addf %57, %75 : vector<4x256xf32>
      %77 = arith.mulf %72, %47 : vector<4x256xf32>
      %78 = arith.addf %59, %77 : vector<4x256xf32>
      %79 = arith.mulf %72, %48 : vector<4x256xf32>
      %80 = arith.addf %61, %79 : vector<4x256xf32>
      %81 = arith.mulf %72, %45 : vector<4x256xf32>
      %82 = arith.addf %63, %81 : vector<4x256xf32>
      %83 = arith.mulf %72, %46 : vector<4x256xf32>
      %84 = arith.addf %65, %83 : vector<4x256xf32>
      %85 = arith.mulf %72, %50 : vector<4x256xf32>
      %86 = arith.addf %67, %85 : vector<4x256xf32>
      %87 = arith.mulf %72, %49 : vector<4x256xf32>
      %88 = arith.addf %69, %87 : vector<4x256xf32>
      %89 = vector.extract_strided_slice %38 {offsets = [2, 0], sizes = [1, 256], strides = [1, 1]} : vector<8x256xf32> to vector<1x256xf32>
      %90 = vector.shape_cast %89 : vector<1x256xf32> to vector<1x256xf32>
      %91 = vector.broadcast %90 : vector<1x256xf32> to vector<4x256xf32>
      %92 = arith.mulf %91, %45 : vector<4x256xf32>
      %93 = arith.addf %74, %92 : vector<4x256xf32>
      %94 = arith.mulf %91, %47 : vector<4x256xf32>
      %95 = arith.subf %76, %94 : vector<4x256xf32>
      %96 = arith.mulf %91, %43 : vector<4x256xf32>
      %97 = arith.addf %78, %96 : vector<4x256xf32>
      %98 = arith.mulf %91, %49 : vector<4x256xf32>
      %99 = arith.addf %80, %98 : vector<4x256xf32>
      %100 = arith.mulf %91, %44 : vector<4x256xf32>
      %101 = arith.subf %82, %100 : vector<4x256xf32>
      %102 = arith.mulf %91, %50 : vector<4x256xf32>
      %103 = arith.subf %84, %102 : vector<4x256xf32>
      %104 = arith.mulf %91, %46 : vector<4x256xf32>
      %105 = arith.addf %86, %104 : vector<4x256xf32>
      %106 = arith.mulf %91, %48 : vector<4x256xf32>
      %107 = arith.subf %88, %106 : vector<4x256xf32>
      %108 = vector.extract_strided_slice %38 {offsets = [3, 0], sizes = [1, 256], strides = [1, 1]} : vector<8x256xf32> to vector<1x256xf32>
      %109 = vector.shape_cast %108 : vector<1x256xf32> to vector<1x256xf32>
      %110 = vector.broadcast %109 : vector<1x256xf32> to vector<4x256xf32>
      %111 = arith.mulf %110, %46 : vector<4x256xf32>
      %112 = arith.addf %93, %111 : vector<4x256xf32>
      %113 = arith.mulf %110, %48 : vector<4x256xf32>
      %114 = arith.subf %95, %113 : vector<4x256xf32>
      %115 = arith.mulf %110, %49 : vector<4x256xf32>
      %116 = arith.subf %97, %115 : vector<4x256xf32>
      %117 = arith.mulf %110, %43 : vector<4x256xf32>
      %118 = arith.addf %99, %117 : vector<4x256xf32>
      %119 = arith.mulf %110, %50 : vector<4x256xf32>
      %120 = arith.addf %101, %119 : vector<4x256xf32>
      %121 = arith.mulf %110, %44 : vector<4x256xf32>
      %122 = arith.subf %103, %121 : vector<4x256xf32>
      %123 = arith.mulf %110, %45 : vector<4x256xf32>
      %124 = arith.subf %105, %123 : vector<4x256xf32>
      %125 = arith.mulf %110, %47 : vector<4x256xf32>
      %126 = arith.addf %107, %125 : vector<4x256xf32>
      %127 = vector.extract_strided_slice %38 {offsets = [4, 0], sizes = [1, 256], strides = [1, 1]} : vector<8x256xf32> to vector<1x256xf32>
      %128 = vector.shape_cast %127 : vector<1x256xf32> to vector<1x256xf32>
      %129 = vector.broadcast %128 : vector<1x256xf32> to vector<4x256xf32>
      %130 = arith.mulf %129, %47 : vector<4x256xf32>
      %131 = arith.subf %112, %130 : vector<4x256xf32>
      %132 = arith.mulf %129, %45 : vector<4x256xf32>
      %133 = arith.addf %114, %132 : vector<4x256xf32>
      %134 = arith.mulf %129, %44 : vector<4x256xf32>
      %135 = arith.subf %116, %134 : vector<4x256xf32>
      %136 = arith.mulf %129, %50 : vector<4x256xf32>
      %137 = arith.subf %118, %136 : vector<4x256xf32>
      %138 = arith.mulf %129, %43 : vector<4x256xf32>
      %139 = arith.addf %120, %138 : vector<4x256xf32>
      %140 = arith.mulf %129, %49 : vector<4x256xf32>
      %141 = arith.addf %122, %140 : vector<4x256xf32>
      %142 = arith.mulf %129, %48 : vector<4x256xf32>
      %143 = arith.subf %124, %142 : vector<4x256xf32>
      %144 = arith.mulf %129, %46 : vector<4x256xf32>
      %145 = arith.addf %126, %144 : vector<4x256xf32>
      %146 = vector.extract_strided_slice %38 {offsets = [5, 0], sizes = [1, 256], strides = [1, 1]} : vector<8x256xf32> to vector<1x256xf32>
      %147 = vector.shape_cast %146 : vector<1x256xf32> to vector<1x256xf32>
      %148 = vector.broadcast %147 : vector<1x256xf32> to vector<4x256xf32>
      %149 = arith.mulf %148, %48 : vector<4x256xf32>
      %150 = arith.subf %131, %149 : vector<4x256xf32>
      %151 = arith.mulf %148, %46 : vector<4x256xf32>
      %152 = arith.addf %133, %151 : vector<4x256xf32>
      %153 = arith.mulf %148, %50 : vector<4x256xf32>
      %154 = arith.addf %135, %153 : vector<4x256xf32>
      %155 = arith.mulf %148, %44 : vector<4x256xf32>
      %156 = arith.subf %137, %155 : vector<4x256xf32>
      %157 = arith.mulf %148, %49 : vector<4x256xf32>
      %158 = arith.subf %139, %157 : vector<4x256xf32>
      %159 = arith.mulf %148, %43 : vector<4x256xf32>
      %160 = arith.addf %141, %159 : vector<4x256xf32>
      %161 = arith.mulf %148, %47 : vector<4x256xf32>
      %162 = arith.addf %143, %161 : vector<4x256xf32>
      %163 = arith.mulf %148, %45 : vector<4x256xf32>
      %164 = arith.subf %145, %163 : vector<4x256xf32>
      %165 = vector.extract_strided_slice %38 {offsets = [6, 0], sizes = [1, 256], strides = [1, 1]} : vector<8x256xf32> to vector<1x256xf32>
      %166 = vector.shape_cast %165 : vector<1x256xf32> to vector<1x256xf32>
      %167 = vector.broadcast %166 : vector<1x256xf32> to vector<4x256xf32>
      %168 = arith.mulf %167, %49 : vector<4x256xf32>
      %169 = arith.subf %150, %168 : vector<4x256xf32>
      %170 = arith.mulf %167, %50 : vector<4x256xf32>
      %171 = arith.subf %152, %170 : vector<4x256xf32>
      %172 = arith.mulf %167, %46 : vector<4x256xf32>
      %173 = arith.addf %154, %172 : vector<4x256xf32>
      %174 = arith.mulf %167, %45 : vector<4x256xf32>
      %175 = arith.subf %156, %174 : vector<4x256xf32>
      %176 = arith.mulf %167, %48 : vector<4x256xf32>
      %177 = arith.addf %158, %176 : vector<4x256xf32>
      %178 = arith.mulf %167, %47 : vector<4x256xf32>
      %179 = arith.subf %160, %178 : vector<4x256xf32>
      %180 = arith.mulf %167, %43 : vector<4x256xf32>
      %181 = arith.addf %162, %180 : vector<4x256xf32>
      %182 = arith.mulf %167, %44 : vector<4x256xf32>
      %183 = arith.addf %164, %182 : vector<4x256xf32>
      %184 = vector.extract_strided_slice %38 {offsets = [7, 0], sizes = [1, 256], strides = [1, 1]} : vector<8x256xf32> to vector<1x256xf32>
      %185 = vector.shape_cast %184 : vector<1x256xf32> to vector<1x256xf32>
      %186 = vector.broadcast %185 : vector<1x256xf32> to vector<4x256xf32>
      %187 = arith.mulf %186, %50 : vector<4x256xf32>
      %188 = arith.subf %169, %187 : vector<4x256xf32>
      %189 = arith.mulf %186, %49 : vector<4x256xf32>
      %190 = arith.subf %171, %189 : vector<4x256xf32>
      %191 = arith.mulf %186, %48 : vector<4x256xf32>
      %192 = arith.addf %173, %191 : vector<4x256xf32>
      %193 = arith.mulf %186, %47 : vector<4x256xf32>
      %194 = arith.subf %175, %193 : vector<4x256xf32>
      %195 = arith.mulf %186, %46 : vector<4x256xf32>
      %196 = arith.addf %177, %195 : vector<4x256xf32>
      %197 = arith.mulf %186, %45 : vector<4x256xf32>
      %198 = arith.subf %179, %197 : vector<4x256xf32>
      %199 = arith.mulf %186, %44 : vector<4x256xf32>
      %200 = arith.addf %181, %199 : vector<4x256xf32>
      %201 = arith.mulf %186, %43 : vector<4x256xf32>
      %202 = arith.addf %183, %201 : vector<4x256xf32>
      scf.yield %188, %190, %192, %194, %196, %198, %200, %202 : vector<4x256xf32>, vector<4x256xf32>, vector<4x256xf32>, vector<4x256xf32>, vector<4x256xf32>, vector<4x256xf32>, vector<4x256xf32>, vector<4x256xf32>
    }
    %c4_i32_7 = arith.constant 4 : i32
    %c0 = arith.constant 0 : index
    %c0_8 = arith.constant 0 : index
    %c0_9 = arith.constant 0 : index
    %10 = vector.load %arg4[%c0, %c0_8, %c0_9] : memref<1x32x256xf32, #tpu.memory_space<vmem>>, vector<1x4x256xf32>
    %11 = vector.shape_cast %10 : vector<1x4x256xf32> to vector<4x256xf32>
    %12 = vector.shape_cast %9#0 : vector<4x256xf32> to vector<1x4x256xf32>
    tpu.vector_store %arg4[%c0, %c0_8, %c0_9], %12 {strides = array<i32>} : memref<1x32x256xf32, #tpu.memory_space<vmem>>, vector<1x4x256xf32>,
    %c0_10 = arith.constant 0 : index
    %c4 = arith.constant 4 : index
    %c0_11 = arith.constant 0 : index
    %13 = vector.load %arg4[%c0_10, %c4, %c0_11] : memref<1x32x256xf32, #tpu.memory_space<vmem>>, vector<1x4x256xf32>
    %14 = vector.shape_cast %13 : vector<1x4x256xf32> to vector<4x256xf32>
    %15 = vector.shape_cast %9#1 : vector<4x256xf32> to vector<1x4x256xf32>
    tpu.vector_store %arg4[%c0_10, %c4, %c0_11], %15 {strides = array<i32>} : memref<1x32x256xf32, #tpu.memory_space<vmem>>, vector<1x4x256xf32>,
    %c0_12 = arith.constant 0 : index
    %c8 = arith.constant 8 : index
    %c0_13 = arith.constant 0 : index
    %16 = vector.load %arg4[%c0_12, %c8, %c0_13] : memref<1x32x256xf32, #tpu.memory_space<vmem>>, vector<1x4x256xf32>
    %17 = vector.shape_cast %16 : vector<1x4x256xf32> to vector<4x256xf32>
    %18 = vector.shape_cast %9#2 : vector<4x256xf32> to vector<1x4x256xf32>
    tpu.vector_store %arg4[%c0_12, %c8, %c0_13], %18 {strides = array<i32>} : memref<1x32x256xf32, #tpu.memory_space<vmem>>, vector<1x4x256xf32>,
    %c0_14 = arith.constant 0 : index
    %c12 = arith.constant 12 : index
    %c0_15 = arith.constant 0 : index
    %19 = vector.load %arg4[%c0_14, %c12, %c0_15] : memref<1x32x256xf32, #tpu.memory_space<vmem>>, vector<1x4x256xf32>
    %20 = vector.shape_cast %19 : vector<1x4x256xf32> to vector<4x256xf32>
    %21 = vector.shape_cast %9#3 : vector<4x256xf32> to vector<1x4x256xf32>
    tpu.vector_store %arg4[%c0_14, %c12, %c0_15], %21 {strides = array<i32>} : memref<1x32x256xf32, #tpu.memory_space<vmem>>, vector<1x4x256xf32>,
    %c0_16 = arith.constant 0 : index
    %c16 = arith.constant 16 : index
    %c0_17 = arith.constant 0 : index
    %22 = vector.load %arg4[%c0_16, %c16, %c0_17] : memref<1x32x256xf32, #tpu.memory_space<vmem>>, vector<1x4x256xf32>
    %23 = vector.shape_cast %22 : vector<1x4x256xf32> to vector<4x256xf32>
    %24 = vector.shape_cast %9#4 : vector<4x256xf32> to vector<1x4x256xf32>
    tpu.vector_store %arg4[%c0_16, %c16, %c0_17], %24 {strides = array<i32>} : memref<1x32x256xf32, #tpu.memory_space<vmem>>, vector<1x4x256xf32>,
    %c0_18 = arith.constant 0 : index
    %c20 = arith.constant 20 : index
    %c0_19 = arith.constant 0 : index
    %25 = vector.load %arg4[%c0_18, %c20, %c0_19] : memref<1x32x256xf32, #tpu.memory_space<vmem>>, vector<1x4x256xf32>
    %26 = vector.shape_cast %25 : vector<1x4x256xf32> to vector<4x256xf32>
    %27 = vector.shape_cast %9#5 : vector<4x256xf32> to vector<1x4x256xf32>
    tpu.vector_store %arg4[%c0_18, %c20, %c0_19], %27 {strides = array<i32>} : memref<1x32x256xf32, #tpu.memory_space<vmem>>, vector<1x4x256xf32>,
    %c0_20 = arith.constant 0 : index
    %c24 = arith.constant 24 : index
    %c0_21 = arith.constant 0 : index
    %28 = vector.load %arg4[%c0_20, %c24, %c0_21] : memref<1x32x256xf32, #tpu.memory_space<vmem>>, vector<1x4x256xf32>
    %29 = vector.shape_cast %28 : vector<1x4x256xf32> to vector<4x256xf32>
    %30 = vector.shape_cast %9#6 : vector<4x256xf32> to vector<1x4x256xf32>
    tpu.vector_store %arg4[%c0_20, %c24, %c0_21], %30 {strides = array<i32>} : memref<1x32x256xf32, #tpu.memory_space<vmem>>, vector<1x4x256xf32>,
    %c0_22 = arith.constant 0 : index
    %c28 = arith.constant 28 : index
    %c0_23 = arith.constant 0 : index
    %31 = vector.load %arg4[%c0_22, %c28, %c0_23] : memref<1x32x256xf32, #tpu.memory_space<vmem>>, vector<1x4x256xf32>
    %32 = vector.shape_cast %31 : vector<1x4x256xf32> to vector<4x256xf32>
    %33 = vector.shape_cast %9#7 : vector<4x256xf32> to vector<1x4x256xf32>
    tpu.vector_store %arg4[%c0_22, %c28, %c0_23], %33 {strides = array<i32>} : memref<1x32x256xf32, #tpu.memory_space<vmem>>, vector<1x4x256xf32>,
    return
  }
  func.func @transform_0(%arg0: i32, %arg1: i32) -> (i32, i32, i32) {
    %c0_i32 = arith.constant 0 : i32
    %c0_i32_0 = arith.constant 0 : i32
    return %arg1, %c0_i32, %arg0 : i32, i32, i32
  }
  func.func @transform_1(%arg0: i32, %arg1: i32) -> (i32, i32, i32) {
    %c0_i32 = arith.constant 0 : i32
    %c0_i32_0 = arith.constant 0 : i32
    %c0_i32_1 = arith.constant 0 : i32
    return %c0_i32, %c0_i32_0, %arg0 : i32, i32, i32
  }
  func.func @transform_2(%arg0: i32, %arg1: i32) -> (i32, i32, i32) {
    %c0_i32 = arith.constant 0 : i32
    %c0_i32_0 = arith.constant 0 : i32
    return %arg1, %c0_i32, %arg0 : i32, i32, i32
  }
}

module attributes {stable_mosaic.version = 11 : i64} {
  func.func @_conv_fuse_kernel(%arg0: i32, %arg1: i32, %arg2: memref<1x32x512xbf16, #tpu.memory_space<vmem>>, %arg3: memref<32x32xbf16, #tpu.memory_space<vmem>>, %arg4: memref<32x1xf32, #tpu.memory_space<vmem>>, %arg5: memref<1x32x512xf32, #tpu.memory_space<vmem>>, %arg6: memref<1x32x512xf32, #tpu.memory_space<vmem>>) attributes {dimension_semantics = [#tpu.dimension_semantics<parallel>, #tpu.dimension_semantics<parallel>], iteration_bounds = array<i64: 2, 1>, scalar_prefetch = 0 : i64, scratch_operands = 0 : i64, tpu.core_type = #tpu.core_type<tc>, window_params = [{transform_indices = @transform_0, window_bounds = array<i64: 1, 32, 512>}, {pipeline_mode = #tpu.pipeline_mode<synchronous>, transform_indices = @transform_1, window_bounds = array<i64: 32, 32>}, {pipeline_mode = #tpu.pipeline_mode<synchronous>, transform_indices = @transform_2, window_bounds = array<i64: 32, 1>}, {transform_indices = @transform_3, window_bounds = array<i64: 1, 32, 512>}, {transform_indices = @transform_4, window_bounds = array<i64: 1, 32, 512>}]} {
    %c0 = arith.constant 0 : index
    %c0_0 = arith.constant 0 : index
    %c0_1 = arith.constant 0 : index
    %0 = vector.load %arg2[%c0, %c0_0, %c0_1] : memref<1x32x512xbf16, #tpu.memory_space<vmem>>, vector<1x32x512xbf16>
    %1 = vector.shape_cast %0 : vector<1x32x512xbf16> to vector<32x512xbf16>
    %c0_2 = arith.constant 0 : index
    %c0_3 = arith.constant 0 : index
    %2 = vector.load %arg3[%c0_2, %c0_3] : memref<32x32xbf16, #tpu.memory_space<vmem>>, vector<32x32xbf16>
    %cst = arith.constant dense<0.000000e+00> : vector<32x512xf32>
    %3 = tpu.matmul %2, %1, %cst {dimension_numbers = #tpu.dot_dimension_numbers<[1], [0], [0], [1], [0, 0, 1, 1], [], []>} : vector<32x32xbf16>, vector<32x512xbf16>, vector<32x512xf32> -> vector<32x512xf32>
    %c0_4 = arith.constant 0 : index
    %c0_5 = arith.constant 0 : index
    %4 = vector.load %arg4[%c0_4, %c0_5] : memref<32x1xf32, #tpu.memory_space<vmem>>, vector<32x1xf32>
    %5 = vector.broadcast %4 : vector<32x1xf32> to vector<32x512xf32>
    %6 = arith.addf %3, %5 : vector<32x512xf32>
    %c0_6 = arith.constant 0 : index
    %c0_7 = arith.constant 0 : index
    %c0_8 = arith.constant 0 : index
    %7 = vector.load %arg5[%c0_6, %c0_7, %c0_8] : memref<1x32x512xf32, #tpu.memory_space<vmem>>, vector<1x32x512xf32>
    %8 = vector.shape_cast %7 : vector<1x32x512xf32> to vector<32x512xf32>
    %9 = arith.addf %6, %8 : vector<32x512xf32>
    %cst_9 = arith.constant 5.000000e-01 : f32
    %10 = vector.broadcast %cst_9 : f32 to vector<32x512xf32>
    %11 = arith.mulf %10, %9 : vector<32x512xf32>
    %cst_10 = arith.constant 0.707106769 : f32
    %12 = vector.broadcast %cst_10 : f32 to vector<32x512xf32>
    %13 = arith.mulf %9, %12 : vector<32x512xf32>
    %14 = math.erf %13 : vector<32x512xf32>
    %cst_11 = arith.constant 1.000000e+00 : f32
    %15 = vector.broadcast %cst_11 : f32 to vector<32x512xf32>
    %16 = arith.addf %15, %14 : vector<32x512xf32>
    %17 = arith.mulf %11, %16 : vector<32x512xf32>
    %c0_12 = arith.constant 0 : index
    %c0_13 = arith.constant 0 : index
    %c0_14 = arith.constant 0 : index
    %18 = vector.load %arg6[%c0_12, %c0_13, %c0_14] : memref<1x32x512xf32, #tpu.memory_space<vmem>>, vector<1x32x512xf32>
    %19 = vector.shape_cast %18 : vector<1x32x512xf32> to vector<32x512xf32>
    %20 = vector.shape_cast %17 : vector<32x512xf32> to vector<1x32x512xf32>
    tpu.vector_store %arg6[%c0_12, %c0_13, %c0_14], %20 {strides = array<i32>} : memref<1x32x512xf32, #tpu.memory_space<vmem>>, vector<1x32x512xf32>,
    return
  }
  func.func @transform_0(%arg0: i32, %arg1: i32) -> (i32, i32, i32) {
    %c0_i32 = arith.constant 0 : i32
    %c0_i32_0 = arith.constant 0 : i32
    return %arg0, %c0_i32, %arg1 : i32, i32, i32
  }
  func.func @transform_1(%arg0: i32, %arg1: i32) -> (i32, i32) {
    %c0_i32 = arith.constant 0 : i32
    %c0_i32_0 = arith.constant 0 : i32
    %c0_i32_1 = arith.constant 0 : i32
    return %c0_i32, %c0_i32_0 : i32, i32
  }
  func.func @transform_2(%arg0: i32, %arg1: i32) -> (i32, i32) {
    %c0_i32 = arith.constant 0 : i32
    %c0_i32_0 = arith.constant 0 : i32
    %c0_i32_1 = arith.constant 0 : i32
    return %c0_i32, %c0_i32_0 : i32, i32
  }
  func.func @transform_3(%arg0: i32, %arg1: i32) -> (i32, i32, i32) {
    %c0_i32 = arith.constant 0 : i32
    %c0_i32_0 = arith.constant 0 : i32
    return %arg0, %c0_i32, %arg1 : i32, i32, i32
  }
  func.func @transform_4(%arg0: i32, %arg1: i32) -> (i32, i32, i32) {
    %c0_i32 = arith.constant 0 : i32
    %c0_i32_0 = arith.constant 0 : i32
    return %arg0, %c0_i32, %arg1 : i32, i32, i32
  }
}

</mosaic_0001>

<llo_original>
// kernel: clifford_fourier_basic_block3d.2
$region0: #{clifford_fourier_basic_block3d.2}
  #allocation0 [shape = 'u32[]', space=smem, size = 0x4, offset = 0x4, fixed_abs, tag = 'smem constant byte address 0x4 - core index']
  #allocation1 [shape = 'u32[144,128]{1,0:T(1,128)}', space=vmem, size = 0x12000, scoped, tag = 'internal scratch']
  %s0 = inlined_call_operand.vmem [shape: f32[2,32,512], index: 0, kind: input, shape index: {}]
  %s1 = inlined_call_operand.vmem [shape: bf16[4,32,512], index: 1, kind: input, shape index: {}]
  %s2 = inlined_call_operand.vmem [shape: f32[2,32,512], index: 2, kind: output, shape index: {}]
  %s3 = sld [smem:[#allocation0]]
  $region128: #{clifford_fourier_basic_block3d.2} parent=0
    _
  %s5 = ssub.s32 1, %s3
  %s6 = scalar_select 0, %s5, %s3
  $region1: #{clifford_fourier_basic_block3d.2} parent=0
    #allocation2 [shape = 'u8[65536]{0}', space=vmem, size = 0x10000, scoped, tag = 'input window, operand 0']
    #allocation3 [shape = 'u8[131072]{0}', space=vmem, size = 0x20000, scoped, tag = 'input window, operand 1']
    #allocation4 [shape = 'u8[65536]{0}', space=vmem, size = 0x10000, scoped, tag = 'output window, operand 0']
    loop: start=0, step=1, limit=6
    $region2: #{clifford_fourier_basic_block3d.2} parent=1 // loop_pre_header
      _
    $region3: #{clifford_fourier_basic_block3d.2} parent=1 // loop_header
      %s8 = sphi 0, %s12
      %p9 = scmp.ge.s32.totalorder %s8, 6
      %s15 = sphi 0, %s27
      %s16 = sphi 0, %s23
      %s17 = sphi 0, %s15
      %s18 = sphi 0, %s16
      %s19 = sphi 0, %s17
      %s20 = sphi 0, %s18
      %s32 = sphi 0, %s34
      %s35 = sphi 0, %s32
      %s36 = sphi 0, %s35
      %s52 = sphi 0, %s36
      %s58 = sphi 0, %s60
      %s61 = sphi 0, %s58
      %s62 = sphi 0, %s61
      %s78 = sphi 0, %s62
      %s86 = sphi 0, %s88
      %s89 = sphi 0, %s86
      %s90 = sphi 0, %s89
      %s106 = sphi 0, %s90
    $region4: #{clifford_fourier_basic_block3d.2} parent=1 // loop_header_branch
      %11 = sbr.rel (%p9) target = $region8
    $region5: #{clifford_fourier_basic_block3d.2} parent=1 // loop_body
      %s13 = ssub.s32 %s8, 1
      %s14 = ssub.s32 %s8, 2
      %s21 = sadd.s32 1, %s16
      %p22 = scmp.ge.s32.totalorder %s21, 2
      %s23 = scalar_select %p22, 0, %s21
      %s24 = sadd.s32 1, %s15
      %s25 = scalar_select %p22, %s24, %s15
      %p26 = scmp.ge.s32.totalorder %s25, 2
      %s27 = scalar_select %p26, 0, %s25
      %s28 = ssub.s32 %s16, %s23
      %s29 = ssub.s32 %s15, %s27
      %s30 = sor.u32 %s28, %s29
      %p31 = scmp.eq.s32.totalorder %s30, 0
      %s33 = sadd.s32 %s32, 1
      %s34 = scalar_select %p31, %s32, %s33
      %p37 = pneg %p31
      %p38 = scmp.eq.s32.totalorder %s8, 3
      %p39 = por %p37, %p38
      %p40 = scmp.ne.s32.totalorder %s32, %s35
      %p41 = scmp.eq.s32.totalorder %s8, 0
      %p42 = por %p40, %p41
      %p43 = scmp.ne.s32.totalorder %s32, %s35
      %p44 = scmp.eq.s32.totalorder %s13, 3
      %p45 = por %p43, %p44
      %p46 = scmp.ne.s32.totalorder %s35, %s36
      %p47 = scmp.eq.s32.totalorder %s13, 0
      %p48 = por %p46, %p47
      %p49 = scmp.ne.s32.totalorder %s35, %s36
      %p50 = scmp.eq.s32.totalorder %s14, 3
      %p51 = por %p49, %p50
      %p53 = scmp.ne.s32.totalorder %s36, %s52
      %p54 = scmp.eq.s32.totalorder %s14, 0
      %p55 = por %p53, %p54
      %s56 = ssub.s32 %s15, %s27
      %p57 = scmp.eq.s32.totalorder %s56, 0
      %s59 = sadd.s32 %s58, 1
      %s60 = scalar_select %p57, %s58, %s59
      %p63 = pneg %p57
      %p64 = scmp.eq.s32.totalorder %s8, 3
      %p65 = por %p63, %p64
      %p66 = scmp.ne.s32.totalorder %s58, %s61
      %p67 = scmp.eq.s32.totalorder %s8, 0
      %p68 = por %p66, %p67
      %p69 = scmp.ne.s32.totalorder %s58, %s61
      %p70 = scmp.eq.s32.totalorder %s13, 3
      %p71 = por %p69, %p70
      %p72 = scmp.ne.s32.totalorder %s61, %s62
      %p73 = scmp.eq.s32.totalorder %s13, 0
      %p74 = por %p72, %p73
      %p75 = scmp.ne.s32.totalorder %s61, %s62
      %p76 = scmp.eq.s32.totalorder %s14, 3
      %p77 = por %p75, %p76
      %p79 = scmp.ne.s32.totalorder %s62, %s78
      %p80 = scmp.eq.s32.totalorder %s14, 0
      %p81 = por %p79, %p80
      %s82 = ssub.s32 %s16, %s23
      %s83 = ssub.s32 %s15, %s27
      %s84 = sor.u32 %s82, %s83
      %p85 = scmp.eq.s32.totalorder %s84, 0
      %s87 = sadd.s32 %s86, 1
      %s88 = scalar_select %p85, %s86, %s87
      %p91 = pneg %p85
      %p92 = scmp.eq.s32.totalorder %s8, 3
      %p93 = por %p91, %p92
      %p94 = scmp.ne.s32.totalorder %s86, %s89
      %p95 = scmp.eq.s32.totalorder %s8, 0
      %p96 = por %p94, %p95
      %p97 = scmp.ne.s32.totalorder %s86, %s89
      %p98 = scmp.eq.s32.totalorder %s13, 3
      %p99 = por %p97, %p98
      %p100 = scmp.ne.s32.totalorder %s89, %s90
      %p101 = scmp.eq.s32.totalorder %s13, 0
      %p102 = por %p100, %p101
      %p103 = scmp.ne.s32.totalorder %s89, %s90
      %p104 = scmp.eq.s32.totalorder %s14, 3
      %p105 = por %p103, %p104
      %p107 = scmp.ne.s32.totalorder %s90, %s106
      %p108 = scmp.eq.s32.totalorder %s14, 0
      %p109 = por %p107, %p108
      %p110 = scmp.le.s32.totalorder 1, %s8
      %p111 = scmp.lt.s32.totalorder %s8, 5
      %p112 = pnand %p110, %p111
      %p113 = pneg %p112
      // Predicated region
      $region9: #{clifford_fourier_basic_block3d.2} parent=5 // pred_check
        _
      $region10: #{clifford_fourier_basic_block3d.2} parent=5 // pred_check_branch
        %115 = sbr.rel (%p112) target = $region12
      $region11: #{clifford_fourier_basic_block3d.2} parent=5 // pred_region
        %s116 = ssub.s32 %s8, 1
      $region12: #{clifford_fourier_basic_block3d.2} parent=5 // pred_fallthru
        _
      %p117 = scmp.lt.s32.totalorder %s8, 4
      // Predicated region
      $region13: #{clifford_fourier_basic_block3d.2} parent=5 // pred_check
        %p118 = pneg %p117
      $region14: #{clifford_fourier_basic_block3d.2} parent=5 // pred_check_branch
        %120 = sbr.rel (%p118) target = $region16
      $region15: #{clifford_fourier_basic_block3d.2} parent=5 // pred_region
        // Predicated region
        $region17: #{clifford_fourier_basic_block3d.2} parent=15 // pred_check
          %p121 = pneg %p42
        $region18: #{clifford_fourier_basic_block3d.2} parent=15 // pred_check_branch
          %123 = sbr.rel (%p121) target = $region20
        $region19: #{clifford_fourier_basic_block3d.2} parent=15 // pred_region
          %s124 = sand.u32 %s32, 1
          %s125 = sand.u32 %s32, 1
          %s126 = smul.addr %s125, 64
          %s127 = scalar_lea.vmem [#allocation2], %s126
          %s128 = smul.u32 2, %s15
          %s129 = smul.addr %s16, 16
          %s130 = sadd.s32 %s128, %s129
          %s131 = smul.addr %s130, 8
          %s132 = scalar_lea.vmem %s0, %s131
          // Predicated region
          $region21: #{clifford_fourier_basic_block3d.2} parent=19 // pred_check
            _
          $region22: #{clifford_fourier_basic_block3d.2} parent=19 // pred_check_branch
            %134 = sbr.rel (0) target = $region24
          $region23: #{clifford_fourier_basic_block3d.2} parent=19 // pred_region
            // Predicated region
            $region25: #{clifford_fourier_basic_block3d.2} parent=23 // pred_check
              _
            $region26: #{clifford_fourier_basic_block3d.2} parent=23 // pred_check_branch
              %136 = sbr.rel (0) target = $region28
            $region27: #{clifford_fourier_basic_block3d.2} parent=23 // pred_region
              loop: start=0, step=1, limit=1
              $region29: #{clifford_fourier_basic_block3d.2} parent=27 // loop_pre_header
                _
              $region30: #{clifford_fourier_basic_block3d.2} parent=27 // loop_header
                %s138 = sphi 0, %s142
                %p139 = scmp.ge.s32.totalorder %s138, 1
                %s143 = sphi %s132, %s132
                %s144 = sphi %s127, %s127
              $region31: #{clifford_fourier_basic_block3d.2} parent=27 // loop_header_branch
                %141 = sbr.rel (%p139) target = $region35
              $region32: #{clifford_fourier_basic_block3d.2} parent=27 // loop_body
                %v145 = vld [vmem:[%s143] sm:$0xff]
                %146 = vst [vmem:[%s144] sm:$0xff] %v145
                %v147 = vld [vmem:[%s143 + $0x8] sm:$0xff]
                %148 = vst [vmem:[%s144 + $0x8] sm:$0xff] %v147
                %v149 = vld [vmem:[%s143 + $0x20] sm:$0xff]
                %150 = vst [vmem:[%s144 + $0x10] sm:$0xff] %v149
                %v151 = vld [vmem:[%s143 + $0x28] sm:$0xff]
                %152 = vst [vmem:[%s144 + $0x18] sm:$0xff] %v151
                %v153 = vld [vmem:[%s143 + $0x40] sm:$0xff]
                %154 = vst [vmem:[%s144 + $0x20] sm:$0xff] %v153
                %v155 = vld [vmem:[%s143 + $0x48] sm:$0xff]
                %156 = vst [vmem:[%s144 + $0x28] sm:$0xff] %v155
                %v157 = vld [vmem:[%s143 + $0x60] sm:$0xff]
                %158 = vst [vmem:[%s144 + $0x30] sm:$0xff] %v157
                %v159 = vld [vmem:[%s143 + $0x68] sm:$0xff]
                %160 = vst [vmem:[%s144 + $0x38] sm:$0xff] %v159
              $region33: #{clifford_fourier_basic_block3d.2} parent=27 // loop_footer
                %s142 = sadd.s32 1, %s138
              $region34: #{clifford_fourier_basic_block3d.2} parent=27 // loop_footer_branch
                %137 = sbr.rel target = $region30
              $region35: #{clifford_fourier_basic_block3d.2} parent=27 // loop_exit
                _
            $region28: #{clifford_fourier_basic_block3d.2} parent=23 // pred_fallthru
              _
            // Predicated region
            $region36: #{clifford_fourier_basic_block3d.2} parent=23 // pred_check
              _
            $region37: #{clifford_fourier_basic_block3d.2} parent=23 // pred_check_branch
              %162 = sbr.rel target = $region39
            $region38: #{clifford_fourier_basic_block3d.2} parent=23 // pred_region
              _
            $region39: #{clifford_fourier_basic_block3d.2} parent=23 // pred_fallthru
              _
          $region24: #{clifford_fourier_basic_block3d.2} parent=19 // pred_fallthru
            _
          %163 = vnop
        $region20: #{clifford_fourier_basic_block3d.2} parent=15 // pred_fallthru
          _
        // Predicated region
        $region40: #{clifford_fourier_basic_block3d.2} parent=15 // pred_check
          %p164 = pneg %p68
        $region41: #{clifford_fourier_basic_block3d.2} parent=15 // pred_check_branch
          %166 = sbr.rel (%p164) target = $region43
        $region42: #{clifford_fourier_basic_block3d.2} parent=15 // pred_region
          %s167 = sand.u32 %s58, 1
          %s168 = sand.u32 %s58, 1
          %s169 = smul.addr %s168, 128
          %s170 = scalar_lea.vmem [#allocation3], %s169
          %s171 = smul.u32 2, %s15
          %s172 = smul.addr %s171, 4
          %s173 = scalar_lea.vmem %s1, %s172
          // Predicated region
          $region44: #{clifford_fourier_basic_block3d.2} parent=42 // pred_check
            _
          $region45: #{clifford_fourier_basic_block3d.2} parent=42 // pred_check_branch
            %175 = sbr.rel (0) target = $region47
          $region46: #{clifford_fourier_basic_block3d.2} parent=42 // pred_region
            // Predicated region
            $region48: #{clifford_fourier_basic_block3d.2} parent=46 // pred_check
              _
            $region49: #{clifford_fourier_basic_block3d.2} parent=46 // pred_check_branch
              %177 = sbr.rel (0) target = $region51
            $region50: #{clifford_fourier_basic_block3d.2} parent=46 // pred_region
              // Predicated region
              $region63: #{clifford_fourier_basic_block3d.2} parent=50 // pred_check
                _
              $region64: #{clifford_fourier_basic_block3d.2} parent=50 // pred_check_branch
                %222 = sbr.rel (0) target = $region66
              $region65: #{clifford_fourier_basic_block3d.2} parent=50 // pred_region
                loop: start=0, step=1, limit=1
                $region67: #{clifford_fourier_basic_block3d.2} parent=65 // loop_pre_header
                  _
                $region68: #{clifford_fourier_basic_block3d.2} parent=65 // loop_header
                  %s224 = sphi 0, %s228
                  %p225 = scmp.ge.s32.totalorder %s224, 1
                  %s229 = sphi %s173, %s173
                  %s230 = sphi %s170, %s170
                $region69: #{clifford_fourier_basic_block3d.2} parent=65 // loop_header_branch
                  %227 = sbr.rel (%p225) target = $region73
                $region70: #{clifford_fourier_basic_block3d.2} parent=65 // loop_body
                  %v231 = vld [vmem:[%s229] sm:$0xff]
                  %232 = vst [vmem:[%s230] sm:$0xff] %v231
                  %v233 = vld [vmem:[%s229 + $0x10] sm:$0xff]
                  %234 = vst [vmem:[%s230 + $0x8] sm:$0xff] %v233
                  %v235 = vld [vmem:[%s229 + $0x20] sm:$0xff]
                  %236 = vst [vmem:[%s230 + $0x10] sm:$0xff] %v235
                  %v237 = vld [vmem:[%s229 + $0x30] sm:$0xff]
                  %238 = vst [vmem:[%s230 + $0x18] sm:$0xff] %v237
                  %v239 = vld [vmem:[%s229 + $0x40] sm:$0xff]
                  %240 = vst [vmem:[%s230 + $0x20] sm:$0xff] %v239
                  %v241 = vld [vmem:[%s229 + $0x50] sm:$0xff]
                  %242 = vst [vmem:[%s230 + $0x28] sm:$0xff] %v241
                  %v243 = vld [vmem:[%s229 + $0x60] sm:$0xff]
                  %244 = vst [vmem:[%s230 + $0x30] sm:$0xff] %v243
                  %v245 = vld [vmem:[%s229 + $0x70] sm:$0xff]
                  %246 = vst [vmem:[%s230 + $0x38] sm:$0xff] %v245
                  %v247 = vld [vmem:[%s229 + $0x80] sm:$0xff]
                  %248 = vst [vmem:[%s230 + $0x40] sm:$0xff] %v247
                  %v249 = vld [vmem:[%s229 + $0x90] sm:$0xff]
                  %250 = vst [vmem:[%s230 + $0x48] sm:$0xff] %v249
                  %v251 = vld [vmem:[%s229 + $0xa0] sm:$0xff]
                  %252 = vst [vmem:[%s230 + $0x50] sm:$0xff] %v251
                  %v253 = vld [vmem:[%s229 + $0xb0] sm:$0xff]
                  %254 = vst [vmem:[%s230 + $0x58] sm:$0xff] %v253
                  %v255 = vld [vmem:[%s229 + $0xc0] sm:$0xff]
                  %256 = vst [vmem:[%s230 + $0x60] sm:$0xff] %v255
                  %v257 = vld [vmem:[%s229 + $0xd0] sm:$0xff]
                  %258 = vst [vmem:[%s230 + $0x68] sm:$0xff] %v257
                  %v259 = vld [vmem:[%s229 + $0xe0] sm:$0xff]
                  %260 = vst [vmem:[%s230 + $0x70] sm:$0xff] %v259
                  %v261 = vld [vmem:[%s229 + $0xf0] sm:$0xff]
                  %262 = vst [vmem:[%s230 + $0x78] sm:$0xff] %v261
                $region71: #{clifford_fourier_basic_block3d.2} parent=65 // loop_footer
                  %s228 = sadd.s32 1, %s224
                $region72: #{clifford_fourier_basic_block3d.2} parent=65 // loop_footer_branch
                  %223 = sbr.rel target = $region68
                $region73: #{clifford_fourier_basic_block3d.2} parent=65 // loop_exit
                  _
              $region66: #{clifford_fourier_basic_block3d.2} parent=50 // pred_fallthru
                _
              // Predicated region
              $region74: #{clifford_fourier_basic_block3d.2} parent=50 // pred_check
                _
              $region75: #{clifford_fourier_basic_block3d.2} parent=50 // pred_check_branch
                %264 = sbr.rel target = $region77
              $region76: #{clifford_fourier_basic_block3d.2} parent=50 // pred_region
                _
              $region77: #{clifford_fourier_basic_block3d.2} parent=50 // pred_fallthru
                _
            $region51: #{clifford_fourier_basic_block3d.2} parent=46 // pred_fallthru
              _
            // Predicated region
            $region52: #{clifford_fourier_basic_block3d.2} parent=46 // pred_check
              _
            $region53: #{clifford_fourier_basic_block3d.2} parent=46 // pred_check_branch
              %179 = sbr.rel target = $region55
            $region54: #{clifford_fourier_basic_block3d.2} parent=46 // pred_region
              loop: start=0, step=1, limit=1
              $region56: #{clifford_fourier_basic_block3d.2} parent=54 // loop_pre_header
                _
              $region57: #{clifford_fourier_basic_block3d.2} parent=54 // loop_header
                %s182 = sphi 0, %s186
                %p183 = scmp.ge.s32.totalorder %s182, 1
                %s187 = sphi %s173, %s173
                %s188 = sphi %s170, %s170
              $region58: #{clifford_fourier_basic_block3d.2} parent=54 // loop_header_branch
                %185 = sbr.rel (%p183) target = $region62
              $region59: #{clifford_fourier_basic_block3d.2} parent=54 // loop_body
                %v189 = vld [vmem:[%s187] sm:$0xff]
                %190 = vst [vmem:[%s188] sm:$0xff] %v189
                %v191 = vld [vmem:[%s187 + $0x10] sm:$0xff]
                %192 = vst [vmem:[%s188 + $0x8] sm:$0xff] %v191
                %v193 = vld [vmem:[%s187 + $0x20] sm:$0xff]
                %194 = vst [vmem:[%s188 + $0x10] sm:$0xff] %v193
                %v195 = vld [vmem:[%s187 + $0x30] sm:$0xff]
                %196 = vst [vmem:[%s188 + $0x18] sm:$0xff] %v195
                %v197 = vld [vmem:[%s187 + $0x40] sm:$0xff]
                %198 = vst [vmem:[%s188 + $0x20] sm:$0xff] %v197
                %v199 = vld [vmem:[%s187 + $0x50] sm:$0xff]
                %200 = vst [vmem:[%s188 + $0x28] sm:$0xff] %v199
                %v201 = vld [vmem:[%s187 + $0x60] sm:$0xff]
                %202 = vst [vmem:[%s188 + $0x30] sm:$0xff] %v201
                %v203 = vld [vmem:[%s187 + $0x70] sm:$0xff]
                %204 = vst [vmem:[%s188 + $0x38] sm:$0xff] %v203
                %v205 = vld [vmem:[%s187 + $0x80] sm:$0xff]
                %206 = vst [vmem:[%s188 + $0x40] sm:$0xff] %v205
                %v207 = vld [vmem:[%s187 + $0x90] sm:$0xff]
                %208 = vst [vmem:[%s188 + $0x48] sm:$0xff] %v207
                %v209 = vld [vmem:[%s187 + $0xa0] sm:$0xff]
                %210 = vst [vmem:[%s188 + $0x50] sm:$0xff] %v209
                %v211 = vld [vmem:[%s187 + $0xb0] sm:$0xff]
                %212 = vst [vmem:[%s188 + $0x58] sm:$0xff] %v211
                %v213 = vld [vmem:[%s187 + $0xc0] sm:$0xff]
                %214 = vst [vmem:[%s188 + $0x60] sm:$0xff] %v213
                %v215 = vld [vmem:[%s187 + $0xd0] sm:$0xff]
                %216 = vst [vmem:[%s188 + $0x68] sm:$0xff] %v215
                %v217 = vld [vmem:[%s187 + $0xe0] sm:$0xff]
                %218 = vst [vmem:[%s188 + $0x70] sm:$0xff] %v217
                %v219 = vld [vmem:[%s187 + $0xf0] sm:$0xff]
                %220 = vst [vmem:[%s188 + $0x78] sm:$0xff] %v219
              $region60: #{clifford_fourier_basic_block3d.2} parent=54 // loop_footer
                %s186 = sadd.s32 1, %s182
              $region61: #{clifford_fourier_basic_block3d.2} parent=54 // loop_footer_branch
                %181 = sbr.rel target = $region57
              $region62: #{clifford_fourier_basic_block3d.2} parent=54 // loop_exit
                _
            $region55: #{clifford_fourier_basic_block3d.2} parent=46 // pred_fallthru
              _
          $region47: #{clifford_fourier_basic_block3d.2} parent=42 // pred_fallthru
            _
          %265 = vnop
        $region43: #{clifford_fourier_basic_block3d.2} parent=15 // pred_fallthru
          _
      $region16: #{clifford_fourier_basic_block3d.2} parent=5 // pred_fallthru
        _
      %p266 = scmp.le.s32.totalorder 1, %s8
      %p267 = scmp.lt.s32.totalorder %s8, 5
      %p268 = pnand %p266, %p267
      %p269 = pneg %p268
      // Predicated region
      $region78: #{clifford_fourier_basic_block3d.2} parent=5 // pred_check
        _
      $region79: #{clifford_fourier_basic_block3d.2} parent=5 // pred_check_branch
        %271 = sbr.rel (%p268) target = $region81
      $region80: #{clifford_fourier_basic_block3d.2} parent=5 // pred_region
        %s272 = ssub.s32 %s8, 1
        %s273 = sand.u32 %s35, 1
        %s274 = sand.u32 %s35, 1
        %s275 = smul.addr %s274, 64
        %s276 = scalar_lea.vmem [#allocation2], %s275
        // Predicated region
        $region82: #{clifford_fourier_basic_block3d.2} parent=80 // pred_check
          %p277 = pneg %p48
        $region83: #{clifford_fourier_basic_block3d.2} parent=80 // pred_check_branch
          %279 = sbr.rel (%p277) target = $region85
        $region84: #{clifford_fourier_basic_block3d.2} parent=80 // pred_region
          _
        $region85: #{clifford_fourier_basic_block3d.2} parent=80 // pred_fallthru
          _
        %s280 = sand.u32 %s61, 1
        %s281 = sand.u32 %s61, 1
        %s282 = smul.addr %s281, 128
        %s283 = scalar_lea.vmem [#allocation3], %s282
        // Predicated region
        $region86: #{clifford_fourier_basic_block3d.2} parent=80 // pred_check
          %p284 = pneg %p74
        $region87: #{clifford_fourier_basic_block3d.2} parent=80 // pred_check_branch
          %286 = sbr.rel (%p284) target = $region89
        $region88: #{clifford_fourier_basic_block3d.2} parent=80 // pred_region
          _
        $region89: #{clifford_fourier_basic_block3d.2} parent=80 // pred_fallthru
          _
        %s287 = sand.u32 %s35, 1
        %s288 = sand.u32 %s35, 1
        %s289 = smul.addr %s288, 64
        %s290 = scalar_lea.vmem [#allocation2], %s289
        %p291 = pneg %p48
        %p292 = pneg %p45
        %s293 = sand.u32 %s61, 1
        %s294 = sand.u32 %s61, 1
        %s295 = smul.addr %s294, 128
        %s296 = scalar_lea.vmem [#allocation3], %s295
        %p297 = pneg %p74
        %p298 = pneg %p71
        %p299 = pneg %p102
        %p300 = pneg %p99
        %s301 = sand.u32 %s89, 1
        %s302 = sand.u32 %s89, 1
        %s303 = smul.addr %s302, 64
        %s304 = scalar_lea.vmem [#allocation4], %s303
        %s305 = smul.u32 2, %s17
        %s306 = smul.u32 2, %s17
        %s307 = smul.u32 2, %s17
        loop: start=0, step=1, limit=4
        $region90: #{clifford_fourier_basic_block3d.2} parent=80 // loop_pre_header
          _
        $region91: #{clifford_fourier_basic_block3d.2} parent=80 // loop_header
          %s309 = sphi 0, %s313
          %p310 = scmp.ge.s32.totalorder %s309, 4
          %v314 = vphi 0.0, %v712
          %v315 = vphi 0.0, %v713
          %v316 = vphi 0.0, %v714
          %v317 = vphi 0.0, %v715
          %v318 = vphi 0.0, %v724
          %v319 = vphi 0.0, %v725
          %v320 = vphi 0.0, %v726
          %v321 = vphi 0.0, %v727
          %v322 = vphi 0.0, %v736
          %v323 = vphi 0.0, %v737
          %v324 = vphi 0.0, %v738
          %v325 = vphi 0.0, %v739
          %v326 = vphi 0.0, %v748
          %v327 = vphi 0.0, %v749
          %v328 = vphi 0.0, %v750
          %v329 = vphi 0.0, %v751
        $region92: #{clifford_fourier_basic_block3d.2} parent=80 // loop_header_branch
          %312 = sbr.rel (%p310) target = $region96
        $region93: #{clifford_fourier_basic_block3d.2} parent=80 // loop_body
          %s330 = smul.u32 %s309, 8
          %s331 = sshra.s32 %s330, 3
          %s332 = sand.u32 %s330, 7
          %s333 = smul.u32 %s331, 2
          %s334 = smul.addr %s333, 8
          %s335 = scalar_lea.vmem %s276, %s334 [#allocation2]
          %v336 = vld [vmem:[%s335] sm:$0xff]
          %v337 = vld [vmem:[%s335 + $0x8] sm:$0xff]
          %s338 = smul.addr %s330, 4
          %s339 = scalar_lea.vmem %s283, %s338 [#allocation3]
          %v340 = vld [vmem:[%s339] sm:$0xff]
          %v341 = vld [vmem:[%s339 + $0x8] sm:$0xff]
          %v342 = vld [vmem:[%s339 + $0x10] sm:$0xff]
          %v343 = vld [vmem:[%s339 + $0x18] sm:$0xff]
          %v344 = vunpack.c.l.bf16 %v340
          %v345 = vunpack.c.h.bf16 %v340
          %v346 = vunpack.c.l.bf16 %v341
          %v347 = vunpack.c.h.bf16 %v341
          %v348 = vunpack.c.l.bf16 %v342
          %v349 = vunpack.c.h.bf16 %v342
          %v350 = vunpack.c.l.bf16 %v343
          %v351 = vunpack.c.h.bf16 %v343
          %v352 = vlaneseq
          %v353 = vshrl.u32 %v352, 7
          %v354 = vsub.s32 0, %v353
          %v355 = vrot.slane %v336, %v354
          %v356 = vlaneseq
          %v357 = vshrl.u32 %v356, 7
          %v358 = vsub.s32 0, %v357
          %v359 = vrot.slane %v337, %v358
          %v360 = vmul.f32 %v355, %v344
          %v361 = vmul.f32 %v359, %v345
          %v362 = vadd.f32 %v314, %v360
          %v363 = vadd.f32 %v315, %v361
          %v364 = vadd.f32 %v316, %v360
          %v365 = vadd.f32 %v317, %v361
          %v366 = vmul.f32 %v355, %v346
          %v367 = vmul.f32 %v359, %v347
          %v368 = vadd.f32 %v318, %v366
          %v369 = vadd.f32 %v319, %v367
          %v370 = vadd.f32 %v320, %v366
          %v371 = vadd.f32 %v321, %v367
          %v372 = vmul.f32 %v355, %v348
          %v373 = vmul.f32 %v359, %v349
          %v374 = vadd.f32 %v322, %v372
          %v375 = vadd.f32 %v323, %v373
          %v376 = vadd.f32 %v324, %v372
          %v377 = vadd.f32 %v325, %v373
          %v378 = vmul.f32 %v355, %v350
          %v379 = vmul.f32 %v359, %v351
          %v380 = vadd.f32 %v326, %v378
          %v381 = vadd.f32 %v327, %v379
          %v382 = vadd.f32 %v328, %v378
          %v383 = vadd.f32 %v329, %v379
          %v384 = vlaneseq
          %v385 = vshrl.u32 %v384, 7
          %v386 = vsub.s32 1, %v385
          %v387 = vrot.slane %v336, %v386
          %v388 = vlaneseq
          %v389 = vshrl.u32 %v388, 7
          %v390 = vsub.s32 1, %v389
          %v391 = vrot.slane %v337, %v390
          %v392 = vmul.f32 %v387, %v344
          %v393 = vmul.f32 %v391, %v345
          %v396 = vrot.slane %v392, 4
          %v397 = vrot.slane %v393, 4
          %v400 = vadd.f32 %v362, %v396
          %v401 = vadd.f32 %v363, %v397
          %v402 = vadd.f32 %v364, %v396
          %v403 = vadd.f32 %v365, %v397
          %v404 = vmul.f32 %v387, %v348
          %v405 = vmul.f32 %v391, %v349
          %v406 = vadd.f32 %v368, %v404
          %v407 = vadd.f32 %v369, %v405
          %v408 = vadd.f32 %v370, %v404
          %v409 = vadd.f32 %v371, %v405
          %v410 = vmul.f32 %v387, %v346
          %v411 = vmul.f32 %v391, %v347
          %v412 = vadd.f32 %v374, %v410
          %v413 = vadd.f32 %v375, %v411
          %v414 = vadd.f32 %v376, %v410
          %v415 = vadd.f32 %v377, %v411
          %v416 = vmul.f32 %v387, %v350
          %v417 = vmul.f32 %v391, %v351
          %v420 = vrot.slane %v416, 4
          %v421 = vrot.slane %v417, 4
          %v424 = vadd.f32 %v380, %v420
          %v425 = vadd.f32 %v381, %v421
          %v426 = vadd.f32 %v382, %v420
          %v427 = vadd.f32 %v383, %v421
          %v428 = vlaneseq
          %v429 = vshrl.u32 %v428, 7
          %v430 = vsub.s32 2, %v429
          %v431 = vrot.slane %v336, %v430
          %v432 = vlaneseq
          %v433 = vshrl.u32 %v432, 7
          %v434 = vsub.s32 2, %v433
          %v435 = vrot.slane %v337, %v434
          %v436 = vmul.f32 %v431, %v346
          %v437 = vmul.f32 %v435, %v347
          %v438 = vadd.f32 %v400, %v436
          %v439 = vadd.f32 %v401, %v437
          %v440 = vmul.f32 %v431, %v348
          %v441 = vmul.f32 %v435, %v349
          %v444 = vrot.slane %v440, 4
          %v445 = vrot.slane %v441, 4
          %v448 = vsub.f32 %v402, %v444
          %v449 = vsub.f32 %v403, %v445
          %v450 = vmul.f32 %v431, %v344
          %v451 = vmul.f32 %v435, %v345
          %v452 = vadd.f32 %v406, %v450
          %v453 = vadd.f32 %v407, %v451
          %v454 = vmul.f32 %v431, %v350
          %v455 = vmul.f32 %v435, %v351
          %v458 = vrot.slane %v454, 4
          %v459 = vrot.slane %v455, 4
          %v462 = vadd.f32 %v408, %v458
          %v463 = vadd.f32 %v409, %v459
          %v466 = vrot.slane %v450, 4
          %v467 = vrot.slane %v451, 4
          %v470 = vsub.f32 %v412, %v466
          %v471 = vsub.f32 %v413, %v467
          %v472 = vsub.f32 %v414, %v454
          %v473 = vsub.f32 %v415, %v455
          %v476 = vrot.slane %v436, 4
          %v477 = vrot.slane %v437, 4
          %v480 = vadd.f32 %v424, %v476
          %v481 = vadd.f32 %v425, %v477
          %v482 = vsub.f32 %v426, %v440
          %v483 = vsub.f32 %v427, %v441
          %v484 = vlaneseq
          %v485 = vshrl.u32 %v484, 7
          %v486 = vsub.s32 3, %v485
          %v487 = vrot.slane %v336, %v486
          %v488 = vlaneseq
          %v489 = vshrl.u32 %v488, 7
          %v490 = vsub.s32 3, %v489
          %v491 = vrot.slane %v337, %v490
          %v492 = vmul.f32 %v487, %v346
          %v493 = vmul.f32 %v491, %v347
          %v496 = vrot.slane %v492, 4
          %v497 = vrot.slane %v493, 4
          %v500 = vadd.f32 %v438, %v496
          %v501 = vadd.f32 %v439, %v497
          %v502 = vmul.f32 %v487, %v348
          %v503 = vmul.f32 %v491, %v349
          %v504 = vsub.f32 %v448, %v502
          %v505 = vsub.f32 %v449, %v503
          %v506 = vmul.f32 %v487, %v350
          %v507 = vmul.f32 %v491, %v351
          %v508 = vsub.f32 %v452, %v506
          %v509 = vsub.f32 %v453, %v507
          %v510 = vmul.f32 %v487, %v344
          %v511 = vmul.f32 %v491, %v345
          %v514 = vrot.slane %v510, 4
          %v515 = vrot.slane %v511, 4
          %v518 = vadd.f32 %v462, %v514
          %v519 = vadd.f32 %v463, %v515
          %v522 = vrot.slane %v506, 4
          %v523 = vrot.slane %v507, 4
          %v526 = vadd.f32 %v470, %v522
          %v527 = vadd.f32 %v471, %v523
          %v528 = vsub.f32 %v472, %v510
          %v529 = vsub.f32 %v473, %v511
          %v530 = vsub.f32 %v480, %v492
          %v531 = vsub.f32 %v481, %v493
          %v534 = vrot.slane %v502, 4
          %v535 = vrot.slane %v503, 4
          %v538 = vadd.f32 %v482, %v534
          %v539 = vadd.f32 %v483, %v535
          %v540 = vlaneseq
          %v541 = vshrl.u32 %v540, 7
          %v542 = vsub.s32 4, %v541
          %v543 = vrot.slane %v336, %v542
          %v544 = vlaneseq
          %v545 = vshrl.u32 %v544, 7
          %v546 = vsub.s32 4, %v545
          %v547 = vrot.slane %v337, %v546
          %v548 = vmul.f32 %v543, %v348
          %v549 = vmul.f32 %v547, %v349
          %v550 = vsub.f32 %v500, %v548
          %v551 = vsub.f32 %v501, %v549
          %v552 = vmul.f32 %v543, %v346
          %v553 = vmul.f32 %v547, %v347
          %v556 = vrot.slane %v552, 4
          %v557 = vrot.slane %v553, 4
          %v560 = vadd.f32 %v504, %v556
          %v561 = vadd.f32 %v505, %v557
          %v562 = vmul.f32 %v543, %v344
          %v563 = vmul.f32 %v547, %v345
          %v566 = vrot.slane %v562, 4
          %v567 = vrot.slane %v563, 4
          %v570 = vsub.f32 %v508, %v566
          %v571 = vsub.f32 %v509, %v567
          %v572 = vmul.f32 %v543, %v350
          %v573 = vmul.f32 %v547, %v351
          %v574 = vsub.f32 %v518, %v572
          %v575 = vsub.f32 %v519, %v573
          %v576 = vadd.f32 %v526, %v562
          %v577 = vadd.f32 %v527, %v563
          %v580 = vrot.slane %v572, 4
          %v581 = vrot.slane %v573, 4
          %v584 = vadd.f32 %v528, %v580
          %v585 = vadd.f32 %v529, %v581
          %v588 = vrot.slane %v548, 4
          %v589 = vrot.slane %v549, 4
          %v592 = vsub.f32 %v530, %v588
          %v593 = vsub.f32 %v531, %v589
          %v594 = vadd.f32 %v538, %v552
          %v595 = vadd.f32 %v539, %v553
          %v596 = vlaneseq
          %v597 = vshrl.u32 %v596, 7
          %v598 = vsub.s32 5, %v597
          %v599 = vrot.slane %v336, %v598
          %v600 = vlaneseq
          %v601 = vshrl.u32 %v600, 7
          %v602 = vsub.s32 5, %v601
          %v603 = vrot.slane %v337, %v602
          %v604 = vmul.f32 %v599, %v348
          %v605 = vmul.f32 %v603, %v349
          %v608 = vrot.slane %v604, 4
          %v609 = vrot.slane %v605, 4
          %v612 = vsub.f32 %v550, %v608
          %v613 = vsub.f32 %v551, %v609
          %v614 = vmul.f32 %v599, %v346
          %v615 = vmul.f32 %v603, %v347
          %v616 = vadd.f32 %v560, %v614
          %v617 = vadd.f32 %v561, %v615
          %v618 = vmul.f32 %v599, %v350
          %v619 = vmul.f32 %v603, %v351
          %v622 = vrot.slane %v618, 4
          %v623 = vrot.slane %v619, 4
          %v626 = vadd.f32 %v570, %v622
          %v627 = vadd.f32 %v571, %v623
          %v628 = vmul.f32 %v599, %v344
          %v629 = vmul.f32 %v603, %v345
          %v630 = vsub.f32 %v574, %v628
          %v631 = vsub.f32 %v575, %v629
          %v632 = vsub.f32 %v576, %v618
          %v633 = vsub.f32 %v577, %v619
          %v636 = vrot.slane %v628, 4
          %v637 = vrot.slane %v629, 4
          %v640 = vadd.f32 %v584, %v636
          %v641 = vadd.f32 %v585, %v637
          %v642 = vadd.f32 %v592, %v604
          %v643 = vadd.f32 %v593, %v605
          %v646 = vrot.slane %v614, 4
          %v647 = vrot.slane %v615, 4
          %v650 = vsub.f32 %v594, %v646
          %v651 = vsub.f32 %v595, %v647
          %v652 = vlaneseq
          %v653 = vshrl.u32 %v652, 7
          %v654 = vsub.s32 6, %v653
          %v655 = vrot.slane %v336, %v654
          %v656 = vlaneseq
          %v657 = vshrl.u32 %v656, 7
          %v658 = vsub.s32 6, %v657
          %v659 = vrot.slane %v337, %v658
          %v660 = vmul.f32 %v655, %v350
          %v661 = vmul.f32 %v659, %v351
          %v662 = vsub.f32 %v612, %v660
          %v663 = vsub.f32 %v613, %v661
          %v664 = vsub.f32 %v616, %v660
          %v665 = vsub.f32 %v617, %v661
          %v666 = vmul.f32 %v655, %v346
          %v667 = vmul.f32 %v659, %v347
          %v670 = vrot.slane %v666, 4
          %v671 = vrot.slane %v667, 4
          %v674 = vadd.f32 %v626, %v670
          %v675 = vadd.f32 %v627, %v671
          %v676 = vsub.f32 %v630, %v670
          %v677 = vsub.f32 %v631, %v671
          %v678 = vmul.f32 %v655, %v348
          %v679 = vmul.f32 %v659, %v349
          %v682 = vrot.slane %v678, 4
          %v683 = vrot.slane %v679, 4
          %v686 = vadd.f32 %v632, %v682
          %v687 = vadd.f32 %v633, %v683
          %v688 = vsub.f32 %v640, %v682
          %v689 = vsub.f32 %v641, %v683
          %v690 = vmul.f32 %v655, %v344
          %v691 = vmul.f32 %v659, %v345
          %v692 = vadd.f32 %v642, %v690
          %v693 = vadd.f32 %v643, %v691
          %v694 = vadd.f32 %v650, %v690
          %v695 = vadd.f32 %v651, %v691
          %v696 = vlaneseq
          %v697 = vshrl.u32 %v696, 7
          %v698 = vsub.s32 7, %v697
          %v699 = vrot.slane %v336, %v698
          %v700 = vlaneseq
          %v701 = vshrl.u32 %v700, 7
          %v702 = vsub.s32 7, %v701
          %v703 = vrot.slane %v337, %v702
          %v704 = vmul.f32 %v699, %v350
          %v705 = vmul.f32 %v703, %v351
          %v708 = vrot.slane %v704, 4
          %v709 = vrot.slane %v705, 4
          %v712 = vsub.f32 %v662, %v708
          %v713 = vsub.f32 %v663, %v709
          %v714 = vsub.f32 %v664, %v708
          %v715 = vsub.f32 %v665, %v709
          %v716 = vmul.f32 %v699, %v348
          %v717 = vmul.f32 %v703, %v349
          %v720 = vrot.slane %v716, 4
          %v721 = vrot.slane %v717, 4
          %v724 = vadd.f32 %v674, %v720
          %v725 = vadd.f32 %v675, %v721
          %v726 = vsub.f32 %v676, %v720
          %v727 = vsub.f32 %v677, %v721
          %v728 = vmul.f32 %v699, %v346
          %v729 = vmul.f32 %v703, %v347
          %v732 = vrot.slane %v728, 4
          %v733 = vrot.slane %v729, 4
          %v736 = vadd.f32 %v686, %v732
          %v737 = vadd.f32 %v687, %v733
          %v738 = vsub.f32 %v688, %v732
          %v739 = vsub.f32 %v689, %v733
          %v740 = vmul.f32 %v699, %v344
          %v741 = vmul.f32 %v703, %v345
          %v744 = vrot.slane %v740, 4
          %v745 = vrot.slane %v741, 4
          %v748 = vadd.f32 %v692, %v744
          %v749 = vadd.f32 %v693, %v745
          %v750 = vadd.f32 %v694, %v744
          %v751 = vadd.f32 %v695, %v745
        $region94: #{clifford_fourier_basic_block3d.2} parent=80 // loop_footer
          %s313 = sadd.s32 1, %s309
        $region95: #{clifford_fourier_basic_block3d.2} parent=80 // loop_footer_branch
          %308 = sbr.rel target = $region91
        $region96: #{clifford_fourier_basic_block3d.2} parent=80 // loop_exit
          _
        %752 = vst [vmem:[%s304] sm:$0xf] %v314
        %753 = vst [vmem:[%s304 + $0x8] sm:$0xf] %v315
        %754 = vst [vmem:[%s304] sm:$0xf0] %v316
        %755 = vst [vmem:[%s304 + $0x8] sm:$0xf0] %v317
        %756 = vst [vmem:[%s304 + $0x10] sm:$0xf] %v318
        %757 = vst [vmem:[%s304 + $0x18] sm:$0xf] %v319
        %758 = vst [vmem:[%s304 + $0x10] sm:$0xf0] %v320
        %759 = vst [vmem:[%s304 + $0x18] sm:$0xf0] %v321
        %760 = vst [vmem:[%s304 + $0x20] sm:$0xf] %v322
        %761 = vst [vmem:[%s304 + $0x28] sm:$0xf] %v323
        %762 = vst [vmem:[%s304 + $0x20] sm:$0xf0] %v324
        %763 = vst [vmem:[%s304 + $0x28] sm:$0xf0] %v325
        %764 = vst [vmem:[%s304 + $0x30] sm:$0xf] %v326
        %765 = vst [vmem:[%s304 + $0x38] sm:$0xf] %v327
        %766 = vst [vmem:[%s304 + $0x30] sm:$0xf0] %v328
        %767 = vst [vmem:[%s304 + $0x38] sm:$0xf0] %v329
        %s768 = sand.u32 %s89, 1
        %s769 = sand.u32 %s89, 1
        %s770 = smul.addr %s769, 64
        %s771 = scalar_lea.vmem [#allocation4], %s770
        // Predicated region
        $region97: #{clifford_fourier_basic_block3d.2} parent=80 // pred_check
          %p772 = pneg %p99
        $region98: #{clifford_fourier_basic_block3d.2} parent=80 // pred_check_branch
          %774 = sbr.rel (%p772) target = $region100
        $region99: #{clifford_fourier_basic_block3d.2} parent=80 // pred_region
          %s775 = smul.u32 2, %s17
          %s776 = smul.addr %s18, 16
          %s777 = sadd.s32 %s775, %s776
          %s778 = smul.addr %s777, 8
          %s779 = scalar_lea.vmem %s2, %s778
          // Predicated region
          $region101: #{clifford_fourier_basic_block3d.2} parent=99 // pred_check
            _
          $region102: #{clifford_fourier_basic_block3d.2} parent=99 // pred_check_branch
            %781 = sbr.rel (0) target = $region104
          $region103: #{clifford_fourier_basic_block3d.2} parent=99 // pred_region
            // Predicated region
            $region105: #{clifford_fourier_basic_block3d.2} parent=103 // pred_check
              _
            $region106: #{clifford_fourier_basic_block3d.2} parent=103 // pred_check_branch
              %783 = sbr.rel (0) target = $region108
            $region107: #{clifford_fourier_basic_block3d.2} parent=103 // pred_region
              loop: start=0, step=1, limit=1
              $region109: #{clifford_fourier_basic_block3d.2} parent=107 // loop_pre_header
                _
              $region110: #{clifford_fourier_basic_block3d.2} parent=107 // loop_header
                %s785 = sphi 0, %s789
                %p786 = scmp.ge.s32.totalorder %s785, 1
                %s790 = sphi %s771, %s771
                %s791 = sphi %s779, %s779
              $region111: #{clifford_fourier_basic_block3d.2} parent=107 // loop_header_branch
                %788 = sbr.rel (%p786) target = $region115
              $region112: #{clifford_fourier_basic_block3d.2} parent=107 // loop_body
                %v792 = vld [vmem:[%s790] sm:$0xff]
                %793 = vst [vmem:[%s791] sm:$0xff] %v792
                %v794 = vld [vmem:[%s790 + $0x8] sm:$0xff]
                %795 = vst [vmem:[%s791 + $0x8] sm:$0xff] %v794
                %v796 = vld [vmem:[%s790 + $0x10] sm:$0xff]
                %797 = vst [vmem:[%s791 + $0x20] sm:$0xff] %v796
                %v798 = vld [vmem:[%s790 + $0x18] sm:$0xff]
                %799 = vst [vmem:[%s791 + $0x28] sm:$0xff] %v798
                %v800 = vld [vmem:[%s790 + $0x20] sm:$0xff]
                %801 = vst [vmem:[%s791 + $0x40] sm:$0xff] %v800
                %v802 = vld [vmem:[%s790 + $0x28] sm:$0xff]
                %803 = vst [vmem:[%s791 + $0x48] sm:$0xff] %v802
                %v804 = vld [vmem:[%s790 + $0x30] sm:$0xff]
                %805 = vst [vmem:[%s791 + $0x60] sm:$0xff] %v804
                %v806 = vld [vmem:[%s790 + $0x38] sm:$0xff]
                %807 = vst [vmem:[%s791 + $0x68] sm:$0xff] %v806
              $region113: #{clifford_fourier_basic_block3d.2} parent=107 // loop_footer
                %s789 = sadd.s32 1, %s785
              $region114: #{clifford_fourier_basic_block3d.2} parent=107 // loop_footer_branch
                %784 = sbr.rel target = $region110
              $region115: #{clifford_fourier_basic_block3d.2} parent=107 // loop_exit
                _
            $region108: #{clifford_fourier_basic_block3d.2} parent=103 // pred_fallthru
              _
            // Predicated region
            $region116: #{clifford_fourier_basic_block3d.2} parent=103 // pred_check
              _
            $region117: #{clifford_fourier_basic_block3d.2} parent=103 // pred_check_branch
              %809 = sbr.rel target = $region119
            $region118: #{clifford_fourier_basic_block3d.2} parent=103 // pred_region
              _
            $region119: #{clifford_fourier_basic_block3d.2} parent=103 // pred_fallthru
              _
          $region104: #{clifford_fourier_basic_block3d.2} parent=99 // pred_fallthru
            _
          %810 = vnop
        $region100: #{clifford_fourier_basic_block3d.2} parent=80 // pred_fallthru
          _
      $region81: #{clifford_fourier_basic_block3d.2} parent=5 // pred_fallthru
        _
      %p811 = scmp.le.s32.totalorder 2, %s8
      // Predicated region
      $region120: #{clifford_fourier_basic_block3d.2} parent=5 // pred_check
        %p812 = pneg %p811
      $region121: #{clifford_fourier_basic_block3d.2} parent=5 // pred_check_branch
        %814 = sbr.rel (%p812) target = $region123
      $region122: #{clifford_fourier_basic_block3d.2} parent=5 // pred_region
        %s815 = ssub.s32 %s8, 2
        // Predicated region
        $region124: #{clifford_fourier_basic_block3d.2} parent=122 // pred_check
          %p816 = pneg %p105
        $region125: #{clifford_fourier_basic_block3d.2} parent=122 // pred_check_branch
          %818 = sbr.rel (%p816) target = $region127
        $region126: #{clifford_fourier_basic_block3d.2} parent=122 // pred_region
          %s819 = sand.u32 %s90, 1
          %s820 = sand.u32 %s90, 1
          %s821 = smul.addr %s820, 64
          %s822 = scalar_lea.vmem [#allocation4], %s821
        $region127: #{clifford_fourier_basic_block3d.2} parent=122 // pred_fallthru
          _
      $region123: #{clifford_fourier_basic_block3d.2} parent=5 // pred_fallthru
        _
    $region6: #{clifford_fourier_basic_block3d.2} parent=1 // loop_footer
      %s12 = sadd.s32 1, %s8
    $region7: #{clifford_fourier_basic_block3d.2} parent=1 // loop_footer_branch
      %7 = sbr.rel target = $region3
    $region8: #{clifford_fourier_basic_block3d.2} parent=1 // loop_exit
      _

// kernel: clifford_fourier_basic_block3d.3
$region0: #{clifford_fourier_basic_block3d.3}
  #allocation0 [shape = 'u32[]', space=smem, size = 0x4, offset = 0x4, fixed_abs, tag = 'smem constant byte address 0x4 - core index']
  #allocation1 [shape = 'u32[144,128]{1,0:T(1,128)}', space=vmem, size = 0x12000, scoped, tag = 'internal scratch']
  %s0 = inlined_call_operand.vmem [shape: bf16[2,32,512], index: 0, kind: input, shape index: {}]
  %s1 = inlined_call_operand.vmem [shape: bf16[32,32], index: 1, kind: input, shape index: {}]
  %s2 = inlined_call_operand.vmem [shape: f32[32,1], index: 2, kind: input, shape index: {}]
  %s3 = inlined_call_operand.vmem [shape: f32[2,32,512], index: 3, kind: input, shape index: {}]
  %s4 = inlined_call_operand.vmem [shape: f32[2,32,512], index: 4, kind: output, shape index: {}]
  %s5 = sld [smem:[#allocation0]]
  $region49: #{clifford_fourier_basic_block3d.3} parent=0
    _
  %s7 = ssub.s32 1, %s5
  %s8 = scalar_select 0, %s7, %s5
  loop: start=0, step=1, limit=4
  $region2: #{clifford_fourier_basic_block3d.3} parent=0 // loop_pre_header
    _
  $region3: #{clifford_fourier_basic_block3d.3} parent=0 // loop_header
    %s10 = sphi 0, %s14
    %p11 = scmp.ge.s32.totalorder %s10, 4
    %s17 = sphi 0, %s29
    %s18 = sphi 0, %s25
    %s19 = sphi 0, %s17
    %s20 = sphi 0, %s18
    %s21 = sphi 0, %s19
    %s22 = sphi 0, %s20
    %s34 = sphi 0, %s36
    %s37 = sphi 0, %s34
    %s38 = sphi 0, %s37
    %s54 = sphi 0, %s38
    %s58 = sphi 0, %s58
    %s60 = sphi 0, %s58
    %s61 = sphi 0, %s60
    %s75 = sphi 0, %s61
    %s79 = sphi 0, %s79
    %s81 = sphi 0, %s79
    %s82 = sphi 0, %s81
    %s96 = sphi 0, %s82
    %s104 = sphi 0, %s106
    %s107 = sphi 0, %s104
    %s108 = sphi 0, %s107
    %s124 = sphi 0, %s108
    %s132 = sphi 0, %s134
    %s135 = sphi 0, %s132
    %s136 = sphi 0, %s135
    %s152 = sphi 0, %s136
  $region4: #{clifford_fourier_basic_block3d.3} parent=0 // loop_header_branch
    %13 = sbr.rel (%p11) target = $region8
  $region5: #{clifford_fourier_basic_block3d.3} parent=0 // loop_body
    %s15 = ssub.s32 %s10, 1
    %s16 = ssub.s32 %s10, 2
    %s23 = sadd.s32 1, %s18
    %p24 = scmp.ge.s32.totalorder %s23, 1
    %s25 = scalar_select %p24, 0, %s23
    %s26 = sadd.s32 1, %s17
    %s27 = scalar_select %p24, %s26, %s17
    %p28 = scmp.ge.s32.totalorder %s27, 2
    %s29 = scalar_select %p28, 0, %s27
    %s30 = ssub.s32 %s17, %s29
    %s31 = ssub.s32 %s18, %s25
    %s32 = sor.u32 %s30, %s31
    %p33 = scmp.eq.s32.totalorder %s32, 0
    %s35 = sadd.s32 %s34, 1
    %s36 = scalar_select %p33, %s34, %s35
    %p39 = pneg %p33
    %p40 = scmp.eq.s32.totalorder %s10, 1
    %p41 = por %p39, %p40
    %p42 = scmp.ne.s32.totalorder %s34, %s37
    %p43 = scmp.eq.s32.totalorder %s10, 0
    %p44 = por %p42, %p43
    %p45 = scmp.ne.s32.totalorder %s34, %s37
    %p46 = scmp.eq.s32.totalorder %s15, 1
    %p47 = por %p45, %p46
    %p48 = scmp.ne.s32.totalorder %s37, %s38
    %p49 = scmp.eq.s32.totalorder %s15, 0
    %p50 = por %p48, %p49
    %p51 = scmp.ne.s32.totalorder %s37, %s38
    %p52 = scmp.eq.s32.totalorder %s16, 1
    %p53 = por %p51, %p52
    %p55 = scmp.ne.s32.totalorder %s38, %s54
    %p56 = scmp.eq.s32.totalorder %s16, 0
    %p57 = por %p55, %p56
    %s59 = sadd.s32 %s58, 1
    %p62 = scmp.eq.s32.totalorder %s10, 1
    %p63 = scmp.ne.s32.totalorder %s58, %s60
    %p64 = scmp.eq.s32.totalorder %s10, 0
    %p65 = por %p63, %p64
    %p66 = scmp.ne.s32.totalorder %s58, %s60
    %p67 = scmp.eq.s32.totalorder %s15, 1
    %p68 = por %p66, %p67
    %p69 = scmp.ne.s32.totalorder %s60, %s61
    %p70 = scmp.eq.s32.totalorder %s15, 0
    %p71 = por %p69, %p70
    %p72 = scmp.ne.s32.totalorder %s60, %s61
    %p73 = scmp.eq.s32.totalorder %s16, 1
    %p74 = por %p72, %p73
    %p76 = scmp.ne.s32.totalorder %s61, %s75
    %p77 = scmp.eq.s32.totalorder %s16, 0
    %p78 = por %p76, %p77
    %s80 = sadd.s32 %s79, 1
    %p83 = scmp.eq.s32.totalorder %s10, 1
    %p84 = scmp.ne.s32.totalorder %s79, %s81
    %p85 = scmp.eq.s32.totalorder %s10, 0
    %p86 = por %p84, %p85
    %p87 = scmp.ne.s32.totalorder %s79, %s81
    %p88 = scmp.eq.s32.totalorder %s15, 1
    %p89 = por %p87, %p88
    %p90 = scmp.ne.s32.totalorder %s81, %s82
    %p91 = scmp.eq.s32.totalorder %s15, 0
    %p92 = por %p90, %p91
    %p93 = scmp.ne.s32.totalorder %s81, %s82
    %p94 = scmp.eq.s32.totalorder %s16, 1
    %p95 = por %p93, %p94
    %p97 = scmp.ne.s32.totalorder %s82, %s96
    %p98 = scmp.eq.s32.totalorder %s16, 0
    %p99 = por %p97, %p98
    %s100 = ssub.s32 %s17, %s29
    %s101 = ssub.s32 %s18, %s25
    %s102 = sor.u32 %s100, %s101
    %p103 = scmp.eq.s32.totalorder %s102, 0
    %s105 = sadd.s32 %s104, 1
    %s106 = scalar_select %p103, %s104, %s105
    %p109 = pneg %p103
    %p110 = scmp.eq.s32.totalorder %s10, 1
    %p111 = por %p109, %p110
    %p112 = scmp.ne.s32.totalorder %s104, %s107
    %p113 = scmp.eq.s32.totalorder %s10, 0
    %p114 = por %p112, %p113
    %p115 = scmp.ne.s32.totalorder %s104, %s107
    %p116 = scmp.eq.s32.totalorder %s15, 1
    %p117 = por %p115, %p116
    %p118 = scmp.ne.s32.totalorder %s107, %s108
    %p119 = scmp.eq.s32.totalorder %s15, 0
    %p120 = por %p118, %p119
    %p121 = scmp.ne.s32.totalorder %s107, %s108
    %p122 = scmp.eq.s32.totalorder %s16, 1
    %p123 = por %p121, %p122
    %p125 = scmp.ne.s32.totalorder %s108, %s124
    %p126 = scmp.eq.s32.totalorder %s16, 0
    %p127 = por %p125, %p126
    %s128 = ssub.s32 %s17, %s29
    %s129 = ssub.s32 %s18, %s25
    %s130 = sor.u32 %s128, %s129
    %p131 = scmp.eq.s32.totalorder %s130, 0
    %s133 = sadd.s32 %s132, 1
    %s134 = scalar_select %p131, %s132, %s133
    %p137 = pneg %p131
    %p138 = scmp.eq.s32.totalorder %s10, 1
    %p139 = por %p137, %p138
    %p140 = scmp.ne.s32.totalorder %s132, %s135
    %p141 = scmp.eq.s32.totalorder %s10, 0
    %p142 = por %p140, %p141
    %p143 = scmp.ne.s32.totalorder %s132, %s135
    %p144 = scmp.eq.s32.totalorder %s15, 1
    %p145 = por %p143, %p144
    %p146 = scmp.ne.s32.totalorder %s135, %s136
    %p147 = scmp.eq.s32.totalorder %s15, 0
    %p148 = por %p146, %p147
    %p149 = scmp.ne.s32.totalorder %s135, %s136
    %p150 = scmp.eq.s32.totalorder %s16, 1
    %p151 = por %p149, %p150
    %p153 = scmp.ne.s32.totalorder %s136, %s152
    %p154 = scmp.eq.s32.totalorder %s16, 0
    %p155 = por %p153, %p154
    %p156 = scmp.le.s32.totalorder 1, %s10
    %p157 = scmp.lt.s32.totalorder %s10, 3
    %p158 = pnand %p156, %p157
    %p159 = pneg %p158
    // Predicated region
    $region9: #{clifford_fourier_basic_block3d.3} parent=5 // pred_check
      _
    $region10: #{clifford_fourier_basic_block3d.3} parent=5 // pred_check_branch
      %161 = sbr.rel (%p158) target = $region12
    $region11: #{clifford_fourier_basic_block3d.3} parent=5 // pred_region
      %s162 = ssub.s32 %s10, 1
      // Predicated region
      $region13: #{clifford_fourier_basic_block3d.3} parent=11 // pred_check
        %p163 = pneg %p71
      $region14: #{clifford_fourier_basic_block3d.3} parent=11 // pred_check_branch
        %165 = sbr.rel (%p163) target = $region16
      $region15: #{clifford_fourier_basic_block3d.3} parent=11 // pred_region
        _
      $region16: #{clifford_fourier_basic_block3d.3} parent=11 // pred_fallthru
        _
      // Predicated region
      $region17: #{clifford_fourier_basic_block3d.3} parent=11 // pred_check
        %p166 = pneg %p92
      $region18: #{clifford_fourier_basic_block3d.3} parent=11 // pred_check_branch
        %168 = sbr.rel (%p166) target = $region20
      $region19: #{clifford_fourier_basic_block3d.3} parent=11 // pred_region
        _
      $region20: #{clifford_fourier_basic_block3d.3} parent=11 // pred_fallthru
        _
    $region12: #{clifford_fourier_basic_block3d.3} parent=5 // pred_fallthru
      _
    %p169 = scmp.lt.s32.totalorder %s10, 2
    // Predicated region
    $region21: #{clifford_fourier_basic_block3d.3} parent=5 // pred_check
      %p170 = pneg %p169
    $region22: #{clifford_fourier_basic_block3d.3} parent=5 // pred_check_branch
      %172 = sbr.rel (%p170) target = $region24
    $region23: #{clifford_fourier_basic_block3d.3} parent=5 // pred_region
      // Predicated region
      $region25: #{clifford_fourier_basic_block3d.3} parent=23 // pred_check
        %p173 = pneg %p44
      $region26: #{clifford_fourier_basic_block3d.3} parent=23 // pred_check_branch
        %175 = sbr.rel (%p173) target = $region28
      $region27: #{clifford_fourier_basic_block3d.3} parent=23 // pred_region
        %s176 = smul.u32 4, %s18
        %p177 = scmp.lt.s32.totalorder %s17, 1
        %s178 = scalar_select %p177, %s17, 1
        %p179 = scmp.lt.s32.totalorder %s176, 3
        %s180 = scalar_select %p179, %s176, 3
        %s181 = smul.addr %s178, 16
        %s182 = sadd.s32 %s180, %s181
        %s183 = smul.addr %s182, 4
        %s184 = scalar_lea.vmem %s0, %s183
        %s185 = smul.u32 4, %s18
      $region28: #{clifford_fourier_basic_block3d.3} parent=23 // pred_fallthru
        _
      // Predicated region
      $region29: #{clifford_fourier_basic_block3d.3} parent=23 // pred_check
        %p186 = pneg %p114
      $region30: #{clifford_fourier_basic_block3d.3} parent=23 // pred_check_branch
        %188 = sbr.rel (%p186) target = $region32
      $region31: #{clifford_fourier_basic_block3d.3} parent=23 // pred_region
        %s189 = smul.u32 4, %s18
        %p190 = scmp.lt.s32.totalorder %s17, 1
        %s191 = scalar_select %p190, %s17, 1
        %p192 = scmp.lt.s32.totalorder %s189, 3
        %s193 = scalar_select %p192, %s189, 3
        %s194 = smul.addr %s191, 16
        %s195 = sadd.s32 %s193, %s194
        %s196 = smul.addr %s195, 8
        %s197 = scalar_lea.vmem %s3, %s196
        %s198 = smul.u32 4, %s18
      $region32: #{clifford_fourier_basic_block3d.3} parent=23 // pred_fallthru
        _
    $region24: #{clifford_fourier_basic_block3d.3} parent=5 // pred_fallthru
      _
    %p199 = scmp.le.s32.totalorder 1, %s10
    %p200 = scmp.lt.s32.totalorder %s10, 3
    %p201 = pnand %p199, %p200
    %p202 = pneg %p201
    // Predicated region
    $region33: #{clifford_fourier_basic_block3d.3} parent=5 // pred_check
      _
    $region34: #{clifford_fourier_basic_block3d.3} parent=5 // pred_check_branch
      %204 = sbr.rel (%p201) target = $region36
    $region35: #{clifford_fourier_basic_block3d.3} parent=5 // pred_region
      %s205 = ssub.s32 %s10, 1
      %s206 = smul.u32 4, %s20
      %p207 = scmp.lt.s32.totalorder %s19, 1
      %s208 = scalar_select %p207, %s19, 1
      %p209 = scmp.lt.s32.totalorder %s206, 3
      %s210 = scalar_select %p209, %s206, 3
      %s211 = smul.addr %s208, 16
      %s212 = sadd.s32 %s210, %s211
      %s213 = smul.addr %s212, 4
      %s214 = scalar_lea.vmem %s0, %s213
      %p215 = pneg %p50
      %p216 = pneg %p47
      %p217 = pneg %p71
      %p218 = pneg %p68
      %p219 = pneg %p92
      %p220 = pneg %p89
      %s221 = smul.u32 4, %s20
      %p222 = scmp.lt.s32.totalorder %s19, 1
      %s223 = scalar_select %p222, %s19, 1
      %p224 = scmp.lt.s32.totalorder %s221, 3
      %s225 = scalar_select %p224, %s221, 3
      %s226 = smul.addr %s223, 16
      %s227 = sadd.s32 %s225, %s226
      %s228 = smul.addr %s227, 8
      %s229 = scalar_lea.vmem %s3, %s228
      %p230 = pneg %p120
      %p231 = pneg %p117
      %p232 = pneg %p148
      %p233 = pneg %p145
      %s234 = smul.u32 4, %s20
      %p235 = scmp.lt.s32.totalorder %s19, 1
      %s236 = scalar_select %p235, %s19, 1
      %p237 = scmp.lt.s32.totalorder %s234, 3
      %s238 = scalar_select %p237, %s234, 3
      %s239 = smul.addr %s236, 16
      %s240 = sadd.s32 %s238, %s239
      %s241 = smul.addr %s240, 8
      %s242 = scalar_lea.vmem %s4, %s241
      %s243 = smul.u32 4, %s20
      %p244 = scmp.lt.s32.totalorder %s19, 1
      %s245 = scalar_select %p244, %s19, 1
      %p246 = scmp.lt.s32.totalorder %s243, 3
      %s247 = scalar_select %p246, %s243, 3
      %s248 = smul.addr %s245, 16
      %s249 = sadd.s32 %s247, %s248
      %s250 = smul.addr %s249, 4
      %s251 = scalar_lea.vmem %s0, %s250
      %s252 = smul.u32 4, %s20
      %s253 = smul.u32 4, %s20
      %p254 = scmp.lt.s32.totalorder %s19, 1
      %s255 = scalar_select %p254, %s19, 1
      %p256 = scmp.lt.s32.totalorder %s253, 3
      %s257 = scalar_select %p256, %s253, 3
      %s258 = smul.addr %s255, 16
      %s259 = sadd.s32 %s257, %s258
      %s260 = smul.addr %s259, 8
      %s261 = scalar_lea.vmem %s3, %s260
      %s262 = smul.u32 4, %s20
      %s263 = smul.u32 4, %s20
      %p264 = scmp.lt.s32.totalorder %s19, 1
      %s265 = scalar_select %p264, %s19, 1
      %p266 = scmp.lt.s32.totalorder %s263, 3
      %s267 = scalar_select %p266, %s263, 3
      %s268 = smul.addr %s265, 16
      %s269 = sadd.s32 %s267, %s268
      %s270 = smul.addr %s269, 8
      %s271 = scalar_lea.vmem %s4, %s270
      %s272 = smul.u32 4, %s20
      %v274 = vld [vmem:[%s251] sm:$0xff]
      %v275 = vld [vmem:[%s251 + $0x8] sm:$0xff]
      %v276 = vld [vmem:[%s251 + $0x10] sm:$0xff]
      %v277 = vld [vmem:[%s251 + $0x18] sm:$0xff]
      %v278 = vld [vmem:[%s251 + $0x20] sm:$0xff]
      %v279 = vld [vmem:[%s251 + $0x28] sm:$0xff]
      %v280 = vld [vmem:[%s251 + $0x30] sm:$0xff]
      %v281 = vld [vmem:[%s251 + $0x38] sm:$0xff]
      %v282 = vld [vmem:[%s1] sm:$0xf]
      %v283 = vld [vmem:[%s1 + $0x4] sm:$0xf]
      %v284 = vld [vmem:[%s1 + $0x8] sm:$0xf]
      %v285 = vld [vmem:[%s1 + $0xc] sm:$0xf]
      %v286 = vld [vmem:[%s2] sm:$0xff]
      %v287 = vld [vmem:[%s2 + $0x8] sm:$0xff]
      %v288 = vld [vmem:[%s2 + $0x10] sm:$0xff]
      %v289 = vld [vmem:[%s2 + $0x18] sm:$0xff]
      %291 = vset.pattern.permute.xlu0 0
      %292 = vperm.xlu0 %291, %v286
      %v293 = vpop.permute.xlu0 %292
      %296 = vset.pattern.permute.xlu0 0
      %297 = vperm.xlu0 %296, %v287
      %v298 = vpop.permute.xlu0 %297
      %301 = vset.pattern.permute.xlu0 0
      %302 = vperm.xlu0 %301, %v288
      %v303 = vpop.permute.xlu0 %302
      %306 = vset.pattern.permute.xlu0 0
      %307 = vperm.xlu0 %306, %v289
      %v308 = vpop.permute.xlu0 %307
      %v314 = vunpack.c.l.b16 %v282
      %v315 = vunpack.c.l.b16 %v283
      %v316 = vunpack.c.l.b16 %v284
      %v317 = vunpack.c.l.b16 %v285
      %v318 = vpack.c.b16 %v315, %v314
      %v319 = vpack.c.b16 %v317, %v316
      %v328 = vunpack.c.l.b16 %v274
      %v329 = vunpack.c.h.b16 %v274
      %v330 = vunpack.c.l.b16 %v275
      %v331 = vunpack.c.h.b16 %v275
      %v332 = vunpack.c.l.b16 %v276
      %v333 = vunpack.c.h.b16 %v276
      %v334 = vunpack.c.l.b16 %v277
      %v335 = vunpack.c.h.b16 %v277
      %v336 = vunpack.c.l.b16 %v278
      %v337 = vunpack.c.h.b16 %v278
      %v338 = vunpack.c.l.b16 %v279
      %v339 = vunpack.c.h.b16 %v279
      %v340 = vunpack.c.l.b16 %v280
      %v341 = vunpack.c.h.b16 %v280
      %v342 = vunpack.c.l.b16 %v281
      %v343 = vunpack.c.h.b16 %v281
      %v344 = vpack.c.b16 %v332, %v328
      %v345 = vpack.c.b16 %v333, %v329
      %v346 = vpack.c.b16 %v334, %v330
      %v347 = vpack.c.b16 %v335, %v331
      %v348 = vpack.c.b16 %v340, %v336
      %v349 = vpack.c.b16 %v341, %v337
      %v350 = vpack.c.b16 %v342, %v338
      %v351 = vpack.c.b16 %v343, %v339
      %vm360 = vcmask 261120
      %v362 = vsel %vm360, %v318, 0
      %v365 = vsel %vm360, %v319, 0
      %367 = vmatprep.subr.bf16.mxu0 %v345
      %368 = vmatpush1.bf16.msra.mxu0 %v344
      %369 = vmatprep.subr.bf16.mxu0 %v349
      %370 = vmatpush1.bf16.msra.mxu0 %v348
      %371 = vmatprep.subr.bf16.mxu0 0
      %372 = vmatpush1.bf16.msra.mxu0 0
      %373 = vmatprep.subr.bf16.mxu0 0
      %374 = vmatpush1.bf16.msra.mxu0 0
      %375 = vmatprep.subr.bf16.mxu0 0
      %376 = vmatpush1.bf16.msra.mxu0 0
      %377 = vmatprep.subr.bf16.mxu0 0
      %378 = vmatpush1.bf16.msra.mxu0 0
      %379 = vmatprep.subr.bf16.mxu0 0
      %380 = vmatpush1.bf16.msra.mxu0 0
      %381 = vmatprep.subr.bf16.mxu0 0
      %382 = vmatpush1.bf16.msra.mxu0 0
      %383 = vmatprep.subr.bf16.mxu0 0
      %384 = vmatpush1.bf16.msra.mxu0 0
      %385 = vmatprep.subr.bf16.mxu0 0
      %386 = vmatpush1.bf16.msra.mxu0 0
      %387 = vmatprep.subr.bf16.mxu0 0
      %388 = vmatpush1.bf16.msra.mxu0 0
      %389 = vmatprep.subr.bf16.mxu0 0
      %390 = vmatpush1.bf16.msra.mxu0 0
      %391 = vmatprep.subr.bf16.mxu0 0
      %392 = vmatpush1.bf16.msra.mxu0 0
      %393 = vmatprep.subr.bf16.mxu0 0
      %394 = vmatpush1.bf16.msra.mxu0 0
      %395 = vmatprep.subr.bf16.mxu0 0
      %396 = vmatpush1.bf16.msra.mxu0 0
      %397 = vmatprep.subr.bf16.mxu0 0
      %398 = vmatpush1.bf16.msra.mxu0 0
      %399 = vmatprep.mubr.bf16.mxu0 0
      %400 = vmatmul.mubr.bf16.gmra.mrb[0].mxu0 %v362
      %v401 = vpop.f32.mrb[0].mxu0
      %v402 = vadd.f32 %v293, %v401
      %v403 = vpop.f32.mrb[0].mxu0
      %v404 = vadd.f32 %v293, %v403
      %v405 = vpop.f32.mrb[0].mxu0
      %v406 = vadd.f32 %v298, %v405
      %v407 = vpop.f32.mrb[0].mxu0
      %v408 = vadd.f32 %v298, %v407
      %409 = vmatprep.mubr.bf16.mxu0 0
      %410 = vmatmul.mubr.bf16.gmra.mrb[0].mxu0 %v365
      %v411 = vpop.f32.mrb[0].mxu0
      %v412 = vadd.f32 %v303, %v411
      %v413 = vpop.f32.mrb[0].mxu0
      %v414 = vadd.f32 %v303, %v413
      %v415 = vpop.f32.mrb[0].mxu0
      %v416 = vadd.f32 %v308, %v415
      %v417 = vpop.f32.mrb[0].mxu0
      %v418 = vadd.f32 %v308, %v417
      %419 = vdwg.mxu0
      %420 = vmatprep.subr.bf16.mxu0 %v347
      %421 = vmatpush1.bf16.msra.mxu0 %v346
      %422 = vmatprep.subr.bf16.mxu0 %v351
      %423 = vmatpush1.bf16.msra.mxu0 %v350
      %424 = vmatprep.subr.bf16.mxu0 0
      %425 = vmatpush1.bf16.msra.mxu0 0
      %426 = vmatprep.subr.bf16.mxu0 0
      %427 = vmatpush1.bf16.msra.mxu0 0
      %428 = vmatprep.subr.bf16.mxu0 0
      %429 = vmatpush1.bf16.msra.mxu0 0
      %430 = vmatprep.subr.bf16.mxu0 0
      %431 = vmatpush1.bf16.msra.mxu0 0
      %432 = vmatprep.subr.bf16.mxu0 0
      %433 = vmatpush1.bf16.msra.mxu0 0
      %434 = vmatprep.subr.bf16.mxu0 0
      %435 = vmatpush1.bf16.msra.mxu0 0
      %436 = vmatprep.subr.bf16.mxu0 0
      %437 = vmatpush1.bf16.msra.mxu0 0
      %438 = vmatprep.subr.bf16.mxu0 0
      %439 = vmatpush1.bf16.msra.mxu0 0
      %440 = vmatprep.subr.bf16.mxu0 0
      %441 = vmatpush1.bf16.msra.mxu0 0
      %442 = vmatprep.subr.bf16.mxu0 0
      %443 = vmatpush1.bf16.msra.mxu0 0
      %444 = vmatprep.subr.bf16.mxu0 0
      %445 = vmatpush1.bf16.msra.mxu0 0
      %446 = vmatprep.subr.bf16.mxu0 0
      %447 = vmatpush1.bf16.msra.mxu0 0
      %448 = vmatprep.subr.bf16.mxu0 0
      %449 = vmatpush1.bf16.msra.mxu0 0
      %450 = vmatprep.subr.bf16.mxu0 0
      %451 = vmatpush1.bf16.msra.mxu0 0
      %452 = vmatprep.mubr.bf16.mxu0 0
      %453 = vmatmul.mubr.bf16.gmra.mrb[0].mxu0 %v362
      %v454 = vpop.f32.mrb[0].mxu0
      %v455 = vadd.f32 %v293, %v454
      %v456 = vpop.f32.mrb[0].mxu0
      %v457 = vadd.f32 %v293, %v456
      %v458 = vpop.f32.mrb[0].mxu0
      %v459 = vadd.f32 %v298, %v458
      %v460 = vpop.f32.mrb[0].mxu0
      %v461 = vadd.f32 %v298, %v460
      %462 = vmatprep.mubr.bf16.mxu0 0
      %463 = vmatmul.mubr.bf16.gmra.mrb[0].mxu0 %v365
      %v464 = vpop.f32.mrb[0].mxu0
      %v465 = vadd.f32 %v303, %v464
      %v466 = vpop.f32.mrb[0].mxu0
      %v467 = vadd.f32 %v303, %v466
      %v468 = vpop.f32.mrb[0].mxu0
      %v469 = vadd.f32 %v308, %v468
      %v470 = vpop.f32.mrb[0].mxu0
      %v471 = vadd.f32 %v308, %v470
      %472 = vdwg.mxu0
      %v473 = vld [vmem:[%s261] sm:$0xff]
      %v474 = vld [vmem:[%s261 + $0x8] sm:$0xff]
      %v475 = vld [vmem:[%s261 + $0x10] sm:$0xff]
      %v476 = vld [vmem:[%s261 + $0x18] sm:$0xff]
      %v477 = vld [vmem:[%s261 + $0x20] sm:$0xff]
      %v478 = vld [vmem:[%s261 + $0x28] sm:$0xff]
      %v479 = vld [vmem:[%s261 + $0x30] sm:$0xff]
      %v480 = vld [vmem:[%s261 + $0x38] sm:$0xff]
      %v481 = vld [vmem:[%s261 + $0x40] sm:$0xff]
      %v482 = vld [vmem:[%s261 + $0x48] sm:$0xff]
      %v483 = vld [vmem:[%s261 + $0x50] sm:$0xff]
      %v484 = vld [vmem:[%s261 + $0x58] sm:$0xff]
      %v485 = vld [vmem:[%s261 + $0x60] sm:$0xff]
      %v486 = vld [vmem:[%s261 + $0x68] sm:$0xff]
      %v487 = vld [vmem:[%s261 + $0x70] sm:$0xff]
      %v488 = vld [vmem:[%s261 + $0x78] sm:$0xff]
      %v489 = vadd.f32 %v402, %v473
      %v490 = vadd.f32 %v404, %v474
      %v491 = vadd.f32 %v455, %v475
      %v492 = vadd.f32 %v457, %v476
      %v493 = vadd.f32 %v406, %v477
      %v494 = vadd.f32 %v408, %v478
      %v495 = vadd.f32 %v459, %v479
      %v496 = vadd.f32 %v461, %v480
      %v497 = vadd.f32 %v412, %v481
      %v498 = vadd.f32 %v414, %v482
      %v499 = vadd.f32 %v465, %v483
      %v500 = vadd.f32 %v467, %v484
      %v501 = vadd.f32 %v416, %v485
      %v502 = vadd.f32 %v418, %v486
      %v503 = vadd.f32 %v469, %v487
      %v504 = vadd.f32 %v471, %v488
      %v505 = vmul.f32 %v489, 0.5
      %v506 = vmul.f32 %v490, 0.5
      %v507 = vmul.f32 %v491, 0.5
      %v508 = vmul.f32 %v492, 0.5
      %v509 = vmul.f32 %v493, 0.5
      %v510 = vmul.f32 %v494, 0.5
      %v511 = vmul.f32 %v495, 0.5
      %v512 = vmul.f32 %v496, 0.5
      %v513 = vmul.f32 %v497, 0.5
      %v514 = vmul.f32 %v498, 0.5
      %v515 = vmul.f32 %v499, 0.5
      %v516 = vmul.f32 %v500, 0.5
      %v517 = vmul.f32 %v501, 0.5
      %v518 = vmul.f32 %v502, 0.5
      %v519 = vmul.f32 %v503, 0.5
      %v520 = vmul.f32 %v504, 0.5
      %v521 = vmul.f32 %v489, 0.70710677
      %v522 = vmul.f32 %v490, 0.70710677
      %v523 = vmul.f32 %v491, 0.70710677
      %v524 = vmul.f32 %v492, 0.70710677
      %v525 = vmul.f32 %v493, 0.70710677
      %v526 = vmul.f32 %v494, 0.70710677
      %v527 = vmul.f32 %v495, 0.70710677
      %v528 = vmul.f32 %v496, 0.70710677
      %v529 = vmul.f32 %v497, 0.70710677
      %v530 = vmul.f32 %v498, 0.70710677
      %v531 = vmul.f32 %v499, 0.70710677
      %v532 = vmul.f32 %v500, 0.70710677
      %v533 = vmul.f32 %v501, 0.70710677
      %v534 = vmul.f32 %v502, 0.70710677
      %v535 = vmul.f32 %v503, 0.70710677
      %v536 = vmul.f32 %v504, 0.70710677
      %v537 = verf.f32.pop %v521
      %v538 = verf.f32.pop %v522
      %v539 = verf.f32.pop %v523
      %v540 = verf.f32.pop %v524
      %v541 = verf.f32.pop %v525
      %v542 = verf.f32.pop %v526
      %v543 = verf.f32.pop %v527
      %v544 = verf.f32.pop %v528
      %v545 = verf.f32.pop %v529
      %v546 = verf.f32.pop %v530
      %v547 = verf.f32.pop %v531
      %v548 = verf.f32.pop %v532
      %v549 = verf.f32.pop %v533
      %v550 = verf.f32.pop %v534
      %v551 = verf.f32.pop %v535
      %v552 = verf.f32.pop %v536
      %v553 = vadd.f32 %v537, 1.0
      %v554 = vadd.f32 %v538, 1.0
      %v555 = vadd.f32 %v539, 1.0
      %v556 = vadd.f32 %v540, 1.0
      %v557 = vadd.f32 %v541, 1.0
      %v558 = vadd.f32 %v542, 1.0
      %v559 = vadd.f32 %v543, 1.0
      %v560 = vadd.f32 %v544, 1.0
      %v561 = vadd.f32 %v545, 1.0
      %v562 = vadd.f32 %v546, 1.0
      %v563 = vadd.f32 %v547, 1.0
      %v564 = vadd.f32 %v548, 1.0
      %v565 = vadd.f32 %v549, 1.0
      %v566 = vadd.f32 %v550, 1.0
      %v567 = vadd.f32 %v551, 1.0
      %v568 = vadd.f32 %v552, 1.0
      %v569 = vmul.f32 %v505, %v553
      %v570 = vmul.f32 %v506, %v554
      %v571 = vmul.f32 %v507, %v555
      %v572 = vmul.f32 %v508, %v556
      %v573 = vmul.f32 %v509, %v557
      %v574 = vmul.f32 %v510, %v558
      %v575 = vmul.f32 %v511, %v559
      %v576 = vmul.f32 %v512, %v560
      %v577 = vmul.f32 %v513, %v561
      %v578 = vmul.f32 %v514, %v562
      %v579 = vmul.f32 %v515, %v563
      %v580 = vmul.f32 %v516, %v564
      %v581 = vmul.f32 %v517, %v565
      %v582 = vmul.f32 %v518, %v566
      %v583 = vmul.f32 %v519, %v567
      %v584 = vmul.f32 %v520, %v568
      %585 = vst [vmem:[%s271] sm:$0xff] %v569
      %586 = vst [vmem:[%s271 + $0x8] sm:$0xff] %v570
      %587 = vst [vmem:[%s271 + $0x10] sm:$0xff] %v571
      %588 = vst [vmem:[%s271 + $0x18] sm:$0xff] %v572
      %589 = vst [vmem:[%s271 + $0x20] sm:$0xff] %v573
      %590 = vst [vmem:[%s271 + $0x28] sm:$0xff] %v574
      %591 = vst [vmem:[%s271 + $0x30] sm:$0xff] %v575
      %592 = vst [vmem:[%s271 + $0x38] sm:$0xff] %v576
      %593 = vst [vmem:[%s271 + $0x40] sm:$0xff] %v577
      %594 = vst [vmem:[%s271 + $0x48] sm:$0xff] %v578
      %595 = vst [vmem:[%s271 + $0x50] sm:$0xff] %v579
      %596 = vst [vmem:[%s271 + $0x58] sm:$0xff] %v580
      %597 = vst [vmem:[%s271 + $0x60] sm:$0xff] %v581
      %598 = vst [vmem:[%s271 + $0x68] sm:$0xff] %v582
      %599 = vst [vmem:[%s271 + $0x70] sm:$0xff] %v583
      %600 = vst [vmem:[%s271 + $0x78] sm:$0xff] %v584
      %s601 = smul.u32 4, %s20
      %p602 = scmp.lt.s32.totalorder %s19, 1
      %s603 = scalar_select %p602, %s19, 1
      %p604 = scmp.lt.s32.totalorder %s601, 3
      %s605 = scalar_select %p604, %s601, 3
      %s606 = smul.addr %s603, 16
      %s607 = sadd.s32 %s605, %s606
      %s608 = smul.addr %s607, 8
      %s609 = scalar_lea.vmem %s4, %s608
      // Predicated region
      $region37: #{clifford_fourier_basic_block3d.3} parent=35 // pred_check
        %p610 = pneg %p145
      $region38: #{clifford_fourier_basic_block3d.3} parent=35 // pred_check_branch
        %612 = sbr.rel (%p610) target = $region40
      $region39: #{clifford_fourier_basic_block3d.3} parent=35 // pred_region
        %s613 = smul.u32 4, %s20
      $region40: #{clifford_fourier_basic_block3d.3} parent=35 // pred_fallthru
        _
    $region36: #{clifford_fourier_basic_block3d.3} parent=5 // pred_fallthru
      _
    %p614 = scmp.le.s32.totalorder 2, %s10
    // Predicated region
    $region41: #{clifford_fourier_basic_block3d.3} parent=5 // pred_check
      %p615 = pneg %p614
    $region42: #{clifford_fourier_basic_block3d.3} parent=5 // pred_check_branch
      %617 = sbr.rel (%p615) target = $region44
    $region43: #{clifford_fourier_basic_block3d.3} parent=5 // pred_region
      %s618 = ssub.s32 %s10, 2
      // Predicated region
      $region45: #{clifford_fourier_basic_block3d.3} parent=43 // pred_check
        %p619 = pneg %p151
      $region46: #{clifford_fourier_basic_block3d.3} parent=43 // pred_check_branch
        %621 = sbr.rel (%p619) target = $region48
      $region47: #{clifford_fourier_basic_block3d.3} parent=43 // pred_region
        %s622 = smul.u32 4, %s22
        %p623 = scmp.lt.s32.totalorder %s21, 1
        %s624 = scalar_select %p623, %s21, 1
        %p625 = scmp.lt.s32.totalorder %s622, 3
        %s626 = scalar_select %p625, %s622, 3
        %s627 = smul.addr %s624, 16
        %s628 = sadd.s32 %s626, %s627
        %s629 = smul.addr %s628, 8
        %s630 = scalar_lea.vmem %s4, %s629
      $region48: #{clifford_fourier_basic_block3d.3} parent=43 // pred_fallthru
        _
    $region44: #{clifford_fourier_basic_block3d.3} parent=5 // pred_fallthru
      _
  $region6: #{clifford_fourier_basic_block3d.3} parent=0 // loop_footer
    %s14 = sadd.s32 1, %s10
  $region7: #{clifford_fourier_basic_block3d.3} parent=0 // loop_footer_branch
    %9 = sbr.rel target = $region3
  $region8: #{clifford_fourier_basic_block3d.3} parent=0 // loop_exit
    _

</llo_original>
